<compile_context>
chip_gen: v7x
topology: tpu7x:2x2x1
jax: 0.10.0
libtpu: 0.0.40
codegen_flags: <defaults>
</compile_context>

<pallas_src>
import math

import jax
import jax.numpy as jnp
from jax.experimental import pallas as pl
from jax.experimental.pallas import tpu as pltpu

INV_SQRT2 = 1.0 / math.sqrt(2.0)


def _round_up(n, m):
    return ((n + m - 1) // m) * m


def _softplus_beta100(x):
    # torch.nn.Softplus(beta=100) with default threshold=20:
    # linear when beta*x > 20, otherwise log1p(exp(beta*x)) / beta.
    bx = 100.0 * x
    safe = jnp.minimum(bx, 30.0)  # keep the unselected branch finite
    return jnp.where(bx > 20.0, x, jnp.log1p(jnp.exp(safe)) * 0.01)


def _make_mlp_kernel(layer_kinds, use_bf16):
    """Kernel body for a fixed layer structure.

    layer_kinds: tuple of "normal" / "skip" per linear layer.
      "normal": params = (W, b), layer computes dot(h, W) + b
      "skip":   params = (W_h, W_xv, b), computes dot(h, W_h) + dot(xv, W_xv) + b
                (the 1/sqrt(2) concat scaling is already folded into W_h/W_xv).
    """
    cdt = jnp.bfloat16 if use_bf16 else jnp.float32

    def kernel(xv_ref, *refs):
        out_ref = refs[-1]
        params = refs[:-1]
        xv_f32 = xv_ref[...].astype(jnp.float32)
        xv_c = xv_f32.astype(cdt)
        h = xv_f32
        idx = 0
        n_layers = len(layer_kinds)
        for l, kind in enumerate(layer_kinds):
            h_c = h.astype(cdt)
            if kind == "skip":
                W_h = params[idx][...]
                W_xv = params[idx + 1][...]
                b = params[idx + 2][...]
                idx += 3
                z = (jnp.dot(h_c, W_h, preferred_element_type=jnp.float32)
                     + jnp.dot(xv_c, W_xv, preferred_element_type=jnp.float32)
                     + b)
            else:
                W = params[idx][...]
                b = params[idx + 1][...]
                idx += 2
                z = jnp.dot(h_c, W, preferred_element_type=jnp.float32) + b
            if l < n_layers - 1:
                z = _softplus_beta100(z)
            h = z
        out_ref[...] = h.astype(out_ref.dtype)

    return kernel


def prepare_params(weights, biases, skip_in, d_in, var_size,
                   compute_dtype=jnp.float32):
    """Host-side parameter prep:
       * layer 0 weight is zero-row-augmented so it consumes xv = [x, vec]
       * skip-layer weight is pre-scaled by 1/sqrt(2) and split into the
         h-rows part and the [x, vec]-rows part (no in-kernel slicing)
       * biases stay f32 (added after f32 MXU accumulation)."""
    skip_in = tuple(skip_in)
    assert 0 not in skip_in, "skip at layer 0 not supported by this kernel"
    d_xv = d_in + var_size
    layer_kinds = []
    arrays = []
    for l, (W, b) in enumerate(zip(weights, biases)):
        W = jnp.asarray(W, jnp.float32)
        b = jnp.asarray(b, jnp.float32)
        if l == 0:
            # first layer sees xv but must only use the x columns
            W_aug = jnp.concatenate(
                [W, jnp.zeros((var_size, W.shape[1]), jnp.float32)], axis=0)
            layer_kinds.append("normal")
            arrays += [W_aug.astype(compute_dtype), b]
        elif l in skip_in:
            W_scaled = W * INV_SQRT2          # fold concat scaling into weights
            h_dim = W.shape[0] - d_xv
            assert h_dim > 0
            layer_kinds.append("skip")
            arrays += [W_scaled[:h_dim].astype(compute_dtype),
                       W_scaled[h_dim:].astype(compute_dtype),
                       b]
        else:
            layer_kinds.append("normal")
            arrays += [W.astype(compute_dtype), b]
    return tuple(layer_kinds), arrays


def implicit_network_forward(x, vec, weights, biases, skip_in, d_in, var_size,
                             block_n=2048, use_bf16=False):
    """Runs the ImplicitNetwork forward pass as a single Pallas kernel,
    tiled over the point dimension only (all weights stay resident in VMEM)."""
    N = x.shape[0]
    out_dim = weights[-1].shape[1]
    compute_dtype = jnp.bfloat16 if use_bf16 else jnp.float32
    layer_kinds, params = prepare_params(weights, biases, skip_in, d_in,
                                         var_size, compute_dtype)

    xv = jnp.concatenate([x.astype(jnp.float32), vec.astype(jnp.float32)],
                         axis=1)

    # Tile size: big enough to hide per-step pipeline overhead, but capped so
    # the "parallel" grid keeps >= 2 steps (v7x has 2 TensorCores).
    if N >= 256:
        block_n = min(block_n, _round_up(pl.cdiv(N, 2), 128))
    else:
        block_n = min(block_n, _round_up(N, 8))
    block_n = max(block_n, 8)

    N_pad = _round_up(N, block_n)
    if N_pad != N:
        xv = jnp.pad(xv, ((0, N_pad - N), (0, 0)))

    kernel = _make_mlp_kernel(layer_kinds, use_bf16)

    in_specs = [pl.BlockSpec((block_n, xv.shape[1]), lambda i: (i, 0))]
    for p in params:
        # Whole weight/bias per step, constant block index -> stays resident.
        in_specs.append(pl.BlockSpec(p.shape, lambda i: (0, 0)))

    out = pl.pallas_call(
        kernel,
        out_shape=jax.ShapeDtypeStruct((N_pad, out_dim), jnp.float32),
        grid_spec=pltpu.PrefetchScalarGridSpec(
            num_scalar_prefetch=0,
            grid=(N_pad // block_n,),
            in_specs=in_specs,
            out_specs=pl.BlockSpec((block_n, out_dim), lambda i: (i, 0)),
        ),
        compiler_params=pltpu.CompilerParams(
            dimension_semantics=("parallel",),
            # explicit so large block_n also fits v5e's smaller default scoped
            # VMEM; a few MiB of activations + <100 KiB weights is ample here.
            vmem_limit_bytes=32 * 1024 * 1024,
        ),
    )(xv, *params)
    return out[:N]


def init_params(key, feature_vector_size, variant_vector_size, d_in,
                hidden_dims, skip_in, bias=1.0):
    """Deterministic geometric init (mirrors ImplicitNetwork.__init__ with
    multires=0, geometric_init=True).  weight_norm at init is the identity
    (g = ||v||), so effective weights equal the initialized ones."""
    d_out = 1
    dims = [d_in] + list(hidden_dims) + [d_out + feature_vector_size]
    num_layers = len(dims)
    weights, biases = [], []
    for l in range(num_layers - 1):
        if l + 1 in skip_in:
            out_dim = dims[l + 1] - dims[0] - variant_vector_size
            assert out_dim > 0
        else:
            out_dim = dims[l + 1]
        in_dim = dims[l]
        key, wk = jax.random.split(key)
        if l == num_layers - 2:
            # normal_(mean=sqrt(pi)/sqrt(dims[l]), std=1e-4), bias = -bias
            W = (math.sqrt(math.pi) / math.sqrt(in_dim)
                 + 1e-4 * jax.random.normal(wk, (out_dim, in_dim), jnp.float32))
            b = jnp.full((1, out_dim), -bias, jnp.float32)
        else:
            # multires == 0 branch: normal_(0, sqrt(2)/sqrt(out_dim)), bias 0
            std = math.sqrt(2.0) / math.sqrt(out_dim)
            W = std * jax.random.normal(wk, (out_dim, in_dim), jnp.float32)
            b = jnp.zeros((1, out_dim), jnp.float32)
        weights.append(W.T)   # store transposed: (in_features, out_features)
        biases.append(b)
    return weights, biases


def reference_forward(x, vec, weights, biases, skip_in):
    """Pure-JAX reference matching the PyTorch forward (multires=0)."""
    # TODO(synk): embed_fn / mask_by_progress omitted — identity for multires=0;
    #             transform_func and gradient()/hessian autodiff live outside
    #             the kernel (JAX autodiff glue around this forward).
    x_in = x
    h = x_in
    n = len(weights)
    for l in range(n):
        if l in skip_in:
            h = jnp.concatenate([h, x_in, vec], axis=1) / math.sqrt(2.0)
        h = h @ weights[l] + biases[l]
        if l < n - 1:
            h = _softplus_beta100(h)
    return h


if __name__ == "__main__":
    key = jax.random.PRNGKey(0)

    # Small, consistent configuration:
    feature_vector_size = 4          # final output dim = 1 + 4 = 5
    variant_vector_size = 2
    d_in = 3
    hidden = [64, 64, 64]
    skip_in = (2,)                   # exercise the skip/concat path
    N = 256                          # number of query points (small demo)

    kp, kx, kv = jax.random.split(key, 3)
    weights, biases = init_params(kp, feature_vector_size, variant_vector_size,
                                  d_in, hidden, skip_in)
    x = jax.random.normal(kx, (N, d_in), jnp.float32)         # coordinates
    vec = jax.random.normal(kv, (N, variant_vector_size), jnp.float32)

    out = implicit_network_forward(x, vec, weights, biases, skip_in,
                                   d_in, variant_vector_size,
                                   block_n=2048, use_bf16=False)
    out = jax.block_until_ready(out)

    ref = reference_forward(x, vec, weights, biases, skip_in)
    assert out.shape == (N, 1 + feature_vector_size)
    assert jnp.allclose(out, ref, atol=1e-4, rtol=1e-4), "mismatch vs reference"

    # sdf(x) would be out[..., 0]; gradient() is autodiff glue outside the kernel.
    print("KERNEL_OK")
</pallas_src>

<mosaic_0001>
module attributes {stable_mosaic.version = 11 : i64} {
  func.func @kernel(%arg0: i32, %arg1: memref<128x5xf32, #tpu.memory_space<vmem>>, %arg2: memref<5x64xf32, #tpu.memory_space<vmem>>, %arg3: memref<1x64xf32, #tpu.memory_space<vmem>>, %arg4: memref<64x59xf32, #tpu.memory_space<vmem>>, %arg5: memref<1x59xf32, #tpu.memory_space<vmem>>, %arg6: memref<59x64xf32, #tpu.memory_space<vmem>>, %arg7: memref<5x64xf32, #tpu.memory_space<vmem>>, %arg8: memref<1x64xf32, #tpu.memory_space<vmem>>, %arg9: memref<64x5xf32, #tpu.memory_space<vmem>>, %arg10: memref<1x5xf32, #tpu.memory_space<vmem>>, %arg11: memref<128x5xf32, #tpu.memory_space<vmem>>) attributes {dimension_semantics = [#tpu.dimension_semantics<parallel>], iteration_bounds = array<i64: 2>, scalar_prefetch = 0 : i64, scratch_operands = 0 : i64, tpu.core_type = #tpu.core_type<tc>, window_params = [{transform_indices = @transform_0, window_bounds = array<i64: 128, 5>}, {pipeline_mode = #tpu.pipeline_mode<synchronous>, transform_indices = @transform_1, window_bounds = array<i64: 5, 64>}, {pipeline_mode = #tpu.pipeline_mode<synchronous>, transform_indices = @transform_2, window_bounds = array<i64: 1, 64>}, {pipeline_mode = #tpu.pipeline_mode<synchronous>, transform_indices = @transform_3, window_bounds = array<i64: 64, 59>}, {pipeline_mode = #tpu.pipeline_mode<synchronous>, transform_indices = @transform_4, window_bounds = array<i64: 1, 59>}, {pipeline_mode = #tpu.pipeline_mode<synchronous>, transform_indices = @transform_5, window_bounds = array<i64: 59, 64>}, {pipeline_mode = #tpu.pipeline_mode<synchronous>, transform_indices = @transform_6, window_bounds = array<i64: 5, 64>}, {pipeline_mode = #tpu.pipeline_mode<synchronous>, transform_indices = @transform_7, window_bounds = array<i64: 1, 64>}, {pipeline_mode = #tpu.pipeline_mode<synchronous>, transform_indices = @transform_8, window_bounds = array<i64: 64, 5>}, {pipeline_mode = #tpu.pipeline_mode<synchronous>, transform_indices = @transform_9, window_bounds = array<i64: 1, 5>}, {transform_indices = @transform_10, window_bounds = array<i64: 128, 5>}]} {
    %c0 = arith.constant 0 : index
    %c0_0 = arith.constant 0 : index
    %0 = vector.load %arg1[%c0, %c0_0] : memref<128x5xf32, #tpu.memory_space<vmem>>, vector<128x5xf32>
    %c0_1 = arith.constant 0 : index
    %c0_2 = arith.constant 0 : index
    %1 = vector.load %arg2[%c0_1, %c0_2] : memref<5x64xf32, #tpu.memory_space<vmem>>, vector<5x64xf32>
    %c0_3 = arith.constant 0 : index
    %c0_4 = arith.constant 0 : index
    %2 = vector.load %arg3[%c0_3, %c0_4] : memref<1x64xf32, #tpu.memory_space<vmem>>, vector<1x64xf32>
    %cst = arith.constant dense<0.000000e+00> : vector<128x64xf32>
    %3 = tpu.matmul %0, %1, %cst {dimension_numbers = #tpu.dot_dimension_numbers<[1], [0], [0], [1], [0, 0, 1, 1], [], []>} : vector<128x5xf32>, vector<5x64xf32>, vector<128x64xf32> -> vector<128x64xf32>
    %4 = vector.broadcast %2 : vector<1x64xf32> to vector<128x64xf32>
    %5 = arith.addf %3, %4 : vector<128x64xf32>
    %cst_5 = arith.constant 1.000000e+02 : f32
    %6 = vector.broadcast %cst_5 : f32 to vector<128x64xf32>
    %7 = arith.mulf %6, %5 : vector<128x64xf32>
    %cst_6 = arith.constant 3.000000e+01 : f32
    %8 = vector.broadcast %cst_6 : f32 to vector<128x64xf32>
    %9 = arith.minimumf %7, %8 : vector<128x64xf32>
    %cst_7 = arith.constant 2.000000e+01 : f32
    %10 = vector.broadcast %cst_7 : f32 to vector<128x64xf32>
    %11 = arith.cmpf ogt, %7, %10 : vector<128x64xf32>
    %12 = math.exp %9 : vector<128x64xf32>
    %13 = math.log1p %12 : vector<128x64xf32>
    %cst_8 = arith.constant 0.00999999977 : f32
    %14 = vector.broadcast %cst_8 : f32 to vector<128x64xf32>
    %15 = arith.mulf %13, %14 : vector<128x64xf32>
    %16 = arith.select %11, %5, %15 : vector<128x64xi1>, vector<128x64xf32>
    %c0_9 = arith.constant 0 : index
    %c0_10 = arith.constant 0 : index
    %17 = vector.load %arg4[%c0_9, %c0_10] : memref<64x59xf32, #tpu.memory_space<vmem>>, vector<64x59xf32>
    %c0_11 = arith.constant 0 : index
    %c0_12 = arith.constant 0 : index
    %18 = vector.load %arg5[%c0_11, %c0_12] : memref<1x59xf32, #tpu.memory_space<vmem>>, vector<1x59xf32>
    %cst_13 = arith.constant dense<0.000000e+00> : vector<128x59xf32>
    %19 = tpu.matmul %16, %17, %cst_13 {dimension_numbers = #tpu.dot_dimension_numbers<[1], [0], [0], [1], [0, 0, 1, 1], [], []>} : vector<128x64xf32>, vector<64x59xf32>, vector<128x59xf32> -> vector<128x59xf32>
    %20 = vector.broadcast %18 : vector<1x59xf32> to vector<128x59xf32>
    %21 = arith.addf %19, %20 : vector<128x59xf32>
    %cst_14 = arith.constant 1.000000e+02 : f32
    %22 = vector.broadcast %cst_14 : f32 to vector<128x59xf32>
    %23 = arith.mulf %22, %21 : vector<128x59xf32>
    %cst_15 = arith.constant 3.000000e+01 : f32
    %24 = vector.broadcast %cst_15 : f32 to vector<128x59xf32>
    %25 = arith.minimumf %23, %24 : vector<128x59xf32>
    %cst_16 = arith.constant 2.000000e+01 : f32
    %26 = vector.broadcast %cst_16 : f32 to vector<128x59xf32>
    %27 = arith.cmpf ogt, %23, %26 : vector<128x59xf32>
    %28 = math.exp %25 : vector<128x59xf32>
    %29 = math.log1p %28 : vector<128x59xf32>
    %cst_17 = arith.constant 0.00999999977 : f32
    %30 = vector.broadcast %cst_17 : f32 to vector<128x59xf32>
    %31 = arith.mulf %29, %30 : vector<128x59xf32>
    %32 = arith.select %27, %21, %31 : vector<128x59xi1>, vector<128x59xf32>
    %c0_18 = arith.constant 0 : index
    %c0_19 = arith.constant 0 : index
    %33 = vector.load %arg6[%c0_18, %c0_19] : memref<59x64xf32, #tpu.memory_space<vmem>>, vector<59x64xf32>
    %c0_20 = arith.constant 0 : index
    %c0_21 = arith.constant 0 : index
    %34 = vector.load %arg7[%c0_20, %c0_21] : memref<5x64xf32, #tpu.memory_space<vmem>>, vector<5x64xf32>
    %c0_22 = arith.constant 0 : index
    %c0_23 = arith.constant 0 : index
    %35 = vector.load %arg8[%c0_22, %c0_23] : memref<1x64xf32, #tpu.memory_space<vmem>>, vector<1x64xf32>
    %cst_24 = arith.constant dense<0.000000e+00> : vector<128x64xf32>
    %36 = tpu.matmul %32, %33, %cst_24 {dimension_numbers = #tpu.dot_dimension_numbers<[1], [0], [0], [1], [0, 0, 1, 1], [], []>} : vector<128x59xf32>, vector<59x64xf32>, vector<128x64xf32> -> vector<128x64xf32>
    %cst_25 = arith.constant dense<0.000000e+00> : vector<128x64xf32>
    %37 = tpu.matmul %0, %34, %cst_25 {dimension_numbers = #tpu.dot_dimension_numbers<[1], [0], [0], [1], [0, 0, 1, 1], [], []>} : vector<128x5xf32>, vector<5x64xf32>, vector<128x64xf32> -> vector<128x64xf32>
    %38 = arith.addf %36, %37 : vector<128x64xf32>
    %39 = vector.broadcast %35 : vector<1x64xf32> to vector<128x64xf32>
    %40 = arith.addf %38, %39 : vector<128x64xf32>
    %cst_26 = arith.constant 1.000000e+02 : f32
    %41 = vector.broadcast %cst_26 : f32 to vector<128x64xf32>
    %42 = arith.mulf %41, %40 : vector<128x64xf32>
    %cst_27 = arith.constant 3.000000e+01 : f32
    %43 = vector.broadcast %cst_27 : f32 to vector<128x64xf32>
    %44 = arith.minimumf %42, %43 : vector<128x64xf32>
    %cst_28 = arith.constant 2.000000e+01 : f32
    %45 = vector.broadcast %cst_28 : f32 to vector<128x64xf32>
    %46 = arith.cmpf ogt, %42, %45 : vector<128x64xf32>
    %47 = math.exp %44 : vector<128x64xf32>
    %48 = math.log1p %47 : vector<128x64xf32>
    %cst_29 = arith.constant 0.00999999977 : f32
    %49 = vector.broadcast %cst_29 : f32 to vector<128x64xf32>
    %50 = arith.mulf %48, %49 : vector<128x64xf32>
    %51 = arith.select %46, %40, %50 : vector<128x64xi1>, vector<128x64xf32>
    %c0_30 = arith.constant 0 : index
    %c0_31 = arith.constant 0 : index
    %52 = vector.load %arg9[%c0_30, %c0_31] : memref<64x5xf32, #tpu.memory_space<vmem>>, vector<64x5xf32>
    %c0_32 = arith.constant 0 : index
    %c0_33 = arith.constant 0 : index
    %53 = vector.load %arg10[%c0_32, %c0_33] : memref<1x5xf32, #tpu.memory_space<vmem>>, vector<1x5xf32>
    %cst_34 = arith.constant dense<0.000000e+00> : vector<128x5xf32>
    %54 = tpu.matmul %51, %52, %cst_34 {dimension_numbers = #tpu.dot_dimension_numbers<[1], [0], [0], [1], [0, 0, 1, 1], [], []>} : vector<128x64xf32>, vector<64x5xf32>, vector<128x5xf32> -> vector<128x5xf32>
    %55 = vector.broadcast %53 : vector<1x5xf32> to vector<128x5xf32>
    %56 = arith.addf %54, %55 : vector<128x5xf32>
    %c0_35 = arith.constant 0 : index
    %c0_36 = arith.constant 0 : index
    %57 = vector.load %arg11[%c0_35, %c0_36] : memref<128x5xf32, #tpu.memory_space<vmem>>, vector<128x5xf32>
    tpu.vector_store %arg11[%c0_35, %c0_36], %56 {strides = array<i32>} : memref<128x5xf32, #tpu.memory_space<vmem>>, vector<128x5xf32>,
    return
  }
  func.func @transform_0(%arg0: i32) -> (i32, i32) {
    %c0_i32 = arith.constant 0 : i32
    %c0_i32_0 = arith.constant 0 : i32
    return %arg0, %c0_i32 : i32, i32
  }
  func.func @transform_1(%arg0: i32) -> (i32, i32) {
    %c0_i32 = arith.constant 0 : i32
    %c0_i32_0 = arith.constant 0 : i32
    %c0_i32_1 = arith.constant 0 : i32
    return %c0_i32, %c0_i32_0 : i32, i32
  }
  func.func @transform_2(%arg0: i32) -> (i32, i32) {
    %c0_i32 = arith.constant 0 : i32
    %c0_i32_0 = arith.constant 0 : i32
    %c0_i32_1 = arith.constant 0 : i32
    return %c0_i32, %c0_i32_0 : i32, i32
  }
  func.func @transform_3(%arg0: i32) -> (i32, i32) {
    %c0_i32 = arith.constant 0 : i32
    %c0_i32_0 = arith.constant 0 : i32
    %c0_i32_1 = arith.constant 0 : i32
    return %c0_i32, %c0_i32_0 : i32, i32
  }
  func.func @transform_4(%arg0: i32) -> (i32, i32) {
    %c0_i32 = arith.constant 0 : i32
    %c0_i32_0 = arith.constant 0 : i32
    %c0_i32_1 = arith.constant 0 : i32
    return %c0_i32, %c0_i32_0 : i32, i32
  }
  func.func @transform_5(%arg0: i32) -> (i32, i32) {
    %c0_i32 = arith.constant 0 : i32
    %c0_i32_0 = arith.constant 0 : i32
    %c0_i32_1 = arith.constant 0 : i32
    return %c0_i32, %c0_i32_0 : i32, i32
  }
  func.func @transform_6(%arg0: i32) -> (i32, i32) {
    %c0_i32 = arith.constant 0 : i32
    %c0_i32_0 = arith.constant 0 : i32
    %c0_i32_1 = arith.constant 0 : i32
    return %c0_i32, %c0_i32_0 : i32, i32
  }
  func.func @transform_7(%arg0: i32) -> (i32, i32) {
    %c0_i32 = arith.constant 0 : i32
    %c0_i32_0 = arith.constant 0 : i32
    %c0_i32_1 = arith.constant 0 : i32
    return %c0_i32, %c0_i32_0 : i32, i32
  }
  func.func @transform_8(%arg0: i32) -> (i32, i32) {
    %c0_i32 = arith.constant 0 : i32
    %c0_i32_0 = arith.constant 0 : i32
    %c0_i32_1 = arith.constant 0 : i32
    return %c0_i32, %c0_i32_0 : i32, i32
  }
  func.func @transform_9(%arg0: i32) -> (i32, i32) {
    %c0_i32 = arith.constant 0 : i32
    %c0_i32_0 = arith.constant 0 : i32
    %c0_i32_1 = arith.constant 0 : i32
    return %c0_i32, %c0_i32_0 : i32, i32
  }
  func.func @transform_10(%arg0: i32) -> (i32, i32) {
    %c0_i32 = arith.constant 0 : i32
    %c0_i32_0 = arith.constant 0 : i32
    return %arg0, %c0_i32 : i32, i32
  }
}

</mosaic_0001>

<llo_original>
// kernel: tpu_custom_call.1
$region0: #{tpu_custom_call.1}
  #allocation0 [shape = 'u32[]', space=smem, size = 0x4, offset = 0x4, fixed_abs, tag = 'smem constant byte address 0x4 - core index']
  #allocation1 [shape = 'u32[144,128]{1,0:T(1,128)}', space=vmem, size = 0x12000, scoped, tag = 'internal scratch']
  %s0 = inlined_call_operand.vmem [shape: f32[256,5], index: 0, kind: input, shape index: {}]
  %s1 = inlined_call_operand.vmem [shape: f32[5,64], index: 1, kind: input, shape index: {}]
  %s2 = inlined_call_operand.vmem [shape: f32[1,64], index: 2, kind: input, shape index: {}]
  %s3 = inlined_call_operand.vmem [shape: f32[64,59], index: 3, kind: input, shape index: {}]
  %s4 = inlined_call_operand.vmem [shape: f32[1,59], index: 4, kind: input, shape index: {}]
  %s5 = inlined_call_operand.vmem [shape: f32[59,64], index: 5, kind: input, shape index: {}]
  %s6 = inlined_call_operand.vmem [shape: f32[5,64], index: 6, kind: input, shape index: {}]
  %s7 = inlined_call_operand.vmem [shape: f32[1,64], index: 7, kind: input, shape index: {}]
  %s8 = inlined_call_operand.vmem [shape: f32[64,5], index: 8, kind: input, shape index: {}]
  %s9 = inlined_call_operand.vmem [shape: f32[1,5], index: 9, kind: input, shape index: {}]
  %s10 = inlined_call_operand.vmem [shape: f32[256,5], index: 10, kind: output, shape index: {}]
  %s11 = sld [smem:[#allocation0]]
  $region73: #{tpu_custom_call.1} parent=0
    _
  %s13 = ssub.s32 1, %s11
  %s14 = scalar_select 0, %s13, %s11
  loop: start=0, step=1, limit=4
  $region2: #{tpu_custom_call.1} parent=0 // loop_pre_header
    _
  $region3: #{tpu_custom_call.1} parent=0 // loop_header
    %s16 = sphi 0, %s20
    %p17 = scmp.ge.s32.totalorder %s16, 4
    %s26 = sphi 0, %s28
    %s29 = sphi 0, %s26
    %s30 = sphi 0, %s29
    %s46 = sphi 0, %s30
    %s50 = sphi 0, %s50
    %s52 = sphi 0, %s50
    %s53 = sphi 0, %s52
    %s67 = sphi 0, %s53
    %s71 = sphi 0, %s71
    %s73 = sphi 0, %s71
    %s74 = sphi 0, %s73
    %s88 = sphi 0, %s74
    %s92 = sphi 0, %s92
    %s94 = sphi 0, %s92
    %s95 = sphi 0, %s94
    %s109 = sphi 0, %s95
    %s113 = sphi 0, %s113
    %s115 = sphi 0, %s113
    %s116 = sphi 0, %s115
    %s130 = sphi 0, %s116
    %s134 = sphi 0, %s134
    %s136 = sphi 0, %s134
    %s137 = sphi 0, %s136
    %s151 = sphi 0, %s137
    %s155 = sphi 0, %s155
    %s157 = sphi 0, %s155
    %s158 = sphi 0, %s157
    %s172 = sphi 0, %s158
    %s176 = sphi 0, %s176
    %s178 = sphi 0, %s176
    %s179 = sphi 0, %s178
    %s193 = sphi 0, %s179
    %s197 = sphi 0, %s197
    %s199 = sphi 0, %s197
    %s200 = sphi 0, %s199
    %s214 = sphi 0, %s200
    %s218 = sphi 0, %s218
    %s220 = sphi 0, %s218
    %s221 = sphi 0, %s220
    %s235 = sphi 0, %s221
    %s241 = sphi 0, %s243
    %s244 = sphi 0, %s241
    %s245 = sphi 0, %s244
    %s261 = sphi 0, %s245
  $region4: #{tpu_custom_call.1} parent=0 // loop_header_branch
    %19 = sbr.rel (%p17) target = $region8
  $region5: #{tpu_custom_call.1} parent=0 // loop_body
    %s21 = ssub.s32 %s16, 1
    %s22 = ssub.s32 %s16, 2
    %s23 = sadd.s32 %s16, 1
    %s24 = ssub.s32 %s16, %s23
    %p25 = scmp.eq.s32.totalorder %s24, 0
    %s27 = sadd.s32 %s26, 1
    %s28 = scalar_select %p25, %s26, %s27
    %p31 = pneg %p25
    %p32 = scmp.eq.s32.totalorder %s16, 1
    %p33 = por %p31, %p32
    %p34 = scmp.ne.s32.totalorder %s26, %s29
    %p35 = scmp.eq.s32.totalorder %s16, 0
    %p36 = por %p34, %p35
    %p37 = scmp.ne.s32.totalorder %s26, %s29
    %p38 = scmp.eq.s32.totalorder %s21, 1
    %p39 = por %p37, %p38
    %p40 = scmp.ne.s32.totalorder %s29, %s30
    %p41 = scmp.eq.s32.totalorder %s21, 0
    %p42 = por %p40, %p41
    %p43 = scmp.ne.s32.totalorder %s29, %s30
    %p44 = scmp.eq.s32.totalorder %s22, 1
    %p45 = por %p43, %p44
    %p47 = scmp.ne.s32.totalorder %s30, %s46
    %p48 = scmp.eq.s32.totalorder %s22, 0
    %p49 = por %p47, %p48
    %s51 = sadd.s32 %s50, 1
    %p54 = scmp.eq.s32.totalorder %s16, 1
    %p55 = scmp.ne.s32.totalorder %s50, %s52
    %p56 = scmp.eq.s32.totalorder %s16, 0
    %p57 = por %p55, %p56
    %p58 = scmp.ne.s32.totalorder %s50, %s52
    %p59 = scmp.eq.s32.totalorder %s21, 1
    %p60 = por %p58, %p59
    %p61 = scmp.ne.s32.totalorder %s52, %s53
    %p62 = scmp.eq.s32.totalorder %s21, 0
    %p63 = por %p61, %p62
    %p64 = scmp.ne.s32.totalorder %s52, %s53
    %p65 = scmp.eq.s32.totalorder %s22, 1
    %p66 = por %p64, %p65
    %p68 = scmp.ne.s32.totalorder %s53, %s67
    %p69 = scmp.eq.s32.totalorder %s22, 0
    %p70 = por %p68, %p69
    %s72 = sadd.s32 %s71, 1
    %p75 = scmp.eq.s32.totalorder %s16, 1
    %p76 = scmp.ne.s32.totalorder %s71, %s73
    %p77 = scmp.eq.s32.totalorder %s16, 0
    %p78 = por %p76, %p77
    %p79 = scmp.ne.s32.totalorder %s71, %s73
    %p80 = scmp.eq.s32.totalorder %s21, 1
    %p81 = por %p79, %p80
    %p82 = scmp.ne.s32.totalorder %s73, %s74
    %p83 = scmp.eq.s32.totalorder %s21, 0
    %p84 = por %p82, %p83
    %p85 = scmp.ne.s32.totalorder %s73, %s74
    %p86 = scmp.eq.s32.totalorder %s22, 1
    %p87 = por %p85, %p86
    %p89 = scmp.ne.s32.totalorder %s74, %s88
    %p90 = scmp.eq.s32.totalorder %s22, 0
    %p91 = por %p89, %p90
    %s93 = sadd.s32 %s92, 1
    %p96 = scmp.eq.s32.totalorder %s16, 1
    %p97 = scmp.ne.s32.totalorder %s92, %s94
    %p98 = scmp.eq.s32.totalorder %s16, 0
    %p99 = por %p97, %p98
    %p100 = scmp.ne.s32.totalorder %s92, %s94
    %p101 = scmp.eq.s32.totalorder %s21, 1
    %p102 = por %p100, %p101
    %p103 = scmp.ne.s32.totalorder %s94, %s95
    %p104 = scmp.eq.s32.totalorder %s21, 0
    %p105 = por %p103, %p104
    %p106 = scmp.ne.s32.totalorder %s94, %s95
    %p107 = scmp.eq.s32.totalorder %s22, 1
    %p108 = por %p106, %p107
    %p110 = scmp.ne.s32.totalorder %s95, %s109
    %p111 = scmp.eq.s32.totalorder %s22, 0
    %p112 = por %p110, %p111
    %s114 = sadd.s32 %s113, 1
    %p117 = scmp.eq.s32.totalorder %s16, 1
    %p118 = scmp.ne.s32.totalorder %s113, %s115
    %p119 = scmp.eq.s32.totalorder %s16, 0
    %p120 = por %p118, %p119
    %p121 = scmp.ne.s32.totalorder %s113, %s115
    %p122 = scmp.eq.s32.totalorder %s21, 1
    %p123 = por %p121, %p122
    %p124 = scmp.ne.s32.totalorder %s115, %s116
    %p125 = scmp.eq.s32.totalorder %s21, 0
    %p126 = por %p124, %p125
    %p127 = scmp.ne.s32.totalorder %s115, %s116
    %p128 = scmp.eq.s32.totalorder %s22, 1
    %p129 = por %p127, %p128
    %p131 = scmp.ne.s32.totalorder %s116, %s130
    %p132 = scmp.eq.s32.totalorder %s22, 0
    %p133 = por %p131, %p132
    %s135 = sadd.s32 %s134, 1
    %p138 = scmp.eq.s32.totalorder %s16, 1
    %p139 = scmp.ne.s32.totalorder %s134, %s136
    %p140 = scmp.eq.s32.totalorder %s16, 0
    %p141 = por %p139, %p140
    %p142 = scmp.ne.s32.totalorder %s134, %s136
    %p143 = scmp.eq.s32.totalorder %s21, 1
    %p144 = por %p142, %p143
    %p145 = scmp.ne.s32.totalorder %s136, %s137
    %p146 = scmp.eq.s32.totalorder %s21, 0
    %p147 = por %p145, %p146
    %p148 = scmp.ne.s32.totalorder %s136, %s137
    %p149 = scmp.eq.s32.totalorder %s22, 1
    %p150 = por %p148, %p149
    %p152 = scmp.ne.s32.totalorder %s137, %s151
    %p153 = scmp.eq.s32.totalorder %s22, 0
    %p154 = por %p152, %p153
    %s156 = sadd.s32 %s155, 1
    %p159 = scmp.eq.s32.totalorder %s16, 1
    %p160 = scmp.ne.s32.totalorder %s155, %s157
    %p161 = scmp.eq.s32.totalorder %s16, 0
    %p162 = por %p160, %p161
    %p163 = scmp.ne.s32.totalorder %s155, %s157
    %p164 = scmp.eq.s32.totalorder %s21, 1
    %p165 = por %p163, %p164
    %p166 = scmp.ne.s32.totalorder %s157, %s158
    %p167 = scmp.eq.s32.totalorder %s21, 0
    %p168 = por %p166, %p167
    %p169 = scmp.ne.s32.totalorder %s157, %s158
    %p170 = scmp.eq.s32.totalorder %s22, 1
    %p171 = por %p169, %p170
    %p173 = scmp.ne.s32.totalorder %s158, %s172
    %p174 = scmp.eq.s32.totalorder %s22, 0
    %p175 = por %p173, %p174
    %s177 = sadd.s32 %s176, 1
    %p180 = scmp.eq.s32.totalorder %s16, 1
    %p181 = scmp.ne.s32.totalorder %s176, %s178
    %p182 = scmp.eq.s32.totalorder %s16, 0
    %p183 = por %p181, %p182
    %p184 = scmp.ne.s32.totalorder %s176, %s178
    %p185 = scmp.eq.s32.totalorder %s21, 1
    %p186 = por %p184, %p185
    %p187 = scmp.ne.s32.totalorder %s178, %s179
    %p188 = scmp.eq.s32.totalorder %s21, 0
    %p189 = por %p187, %p188
    %p190 = scmp.ne.s32.totalorder %s178, %s179
    %p191 = scmp.eq.s32.totalorder %s22, 1
    %p192 = por %p190, %p191
    %p194 = scmp.ne.s32.totalorder %s179, %s193
    %p195 = scmp.eq.s32.totalorder %s22, 0
    %p196 = por %p194, %p195
    %s198 = sadd.s32 %s197, 1
    %p201 = scmp.eq.s32.totalorder %s16, 1
    %p202 = scmp.ne.s32.totalorder %s197, %s199
    %p203 = scmp.eq.s32.totalorder %s16, 0
    %p204 = por %p202, %p203
    %p205 = scmp.ne.s32.totalorder %s197, %s199
    %p206 = scmp.eq.s32.totalorder %s21, 1
    %p207 = por %p205, %p206
    %p208 = scmp.ne.s32.totalorder %s199, %s200
    %p209 = scmp.eq.s32.totalorder %s21, 0
    %p210 = por %p208, %p209
    %p211 = scmp.ne.s32.totalorder %s199, %s200
    %p212 = scmp.eq.s32.totalorder %s22, 1
    %p213 = por %p211, %p212
    %p215 = scmp.ne.s32.totalorder %s200, %s214
    %p216 = scmp.eq.s32.totalorder %s22, 0
    %p217 = por %p215, %p216
    %s219 = sadd.s32 %s218, 1
    %p222 = scmp.eq.s32.totalorder %s16, 1
    %p223 = scmp.ne.s32.totalorder %s218, %s220
    %p224 = scmp.eq.s32.totalorder %s16, 0
    %p225 = por %p223, %p224
    %p226 = scmp.ne.s32.totalorder %s218, %s220
    %p227 = scmp.eq.s32.totalorder %s21, 1
    %p228 = por %p226, %p227
    %p229 = scmp.ne.s32.totalorder %s220, %s221
    %p230 = scmp.eq.s32.totalorder %s21, 0
    %p231 = por %p229, %p230
    %p232 = scmp.ne.s32.totalorder %s220, %s221
    %p233 = scmp.eq.s32.totalorder %s22, 1
    %p234 = por %p232, %p233
    %p236 = scmp.ne.s32.totalorder %s221, %s235
    %p237 = scmp.eq.s32.totalorder %s22, 0
    %p238 = por %p236, %p237
    %s239 = ssub.s32 %s16, %s23
    %p240 = scmp.eq.s32.totalorder %s239, 0
    %s242 = sadd.s32 %s241, 1
    %s243 = scalar_select %p240, %s241, %s242
    %p246 = pneg %p240
    %p247 = scmp.eq.s32.totalorder %s16, 1
    %p248 = por %p246, %p247
    %p249 = scmp.ne.s32.totalorder %s241, %s244
    %p250 = scmp.eq.s32.totalorder %s16, 0
    %p251 = por %p249, %p250
    %p252 = scmp.ne.s32.totalorder %s241, %s244
    %p253 = scmp.eq.s32.totalorder %s21, 1
    %p254 = por %p252, %p253
    %p255 = scmp.ne.s32.totalorder %s244, %s245
    %p256 = scmp.eq.s32.totalorder %s21, 0
    %p257 = por %p255, %p256
    %p258 = scmp.ne.s32.totalorder %s244, %s245
    %p259 = scmp.eq.s32.totalorder %s22, 1
    %p260 = por %p258, %p259
    %p262 = scmp.ne.s32.totalorder %s245, %s261
    %p263 = scmp.eq.s32.totalorder %s22, 0
    %p264 = por %p262, %p263
    %p265 = scmp.le.s32.totalorder 1, %s16
    %p266 = scmp.lt.s32.totalorder %s16, 3
    %p267 = pnand %p265, %p266
    %p268 = pneg %p267
    // Predicated region
    $region9: #{tpu_custom_call.1} parent=5 // pred_check
      _
    $region10: #{tpu_custom_call.1} parent=5 // pred_check_branch
      %270 = sbr.rel (%p267) target = $region12
    $region11: #{tpu_custom_call.1} parent=5 // pred_region
      %s271 = ssub.s32 %s16, 1
      // Predicated region
      $region13: #{tpu_custom_call.1} parent=11 // pred_check
        %p272 = pneg %p63
      $region14: #{tpu_custom_call.1} parent=11 // pred_check_branch
        %274 = sbr.rel (%p272) target = $region16
      $region15: #{tpu_custom_call.1} parent=11 // pred_region
        _
      $region16: #{tpu_custom_call.1} parent=11 // pred_fallthru
        _
      // Predicated region
      $region17: #{tpu_custom_call.1} parent=11 // pred_check
        %p275 = pneg %p84
      $region18: #{tpu_custom_call.1} parent=11 // pred_check_branch
        %277 = sbr.rel (%p275) target = $region20
      $region19: #{tpu_custom_call.1} parent=11 // pred_region
        _
      $region20: #{tpu_custom_call.1} parent=11 // pred_fallthru
        _
      // Predicated region
      $region21: #{tpu_custom_call.1} parent=11 // pred_check
        %p278 = pneg %p105
      $region22: #{tpu_custom_call.1} parent=11 // pred_check_branch
        %280 = sbr.rel (%p278) target = $region24
      $region23: #{tpu_custom_call.1} parent=11 // pred_region
        _
      $region24: #{tpu_custom_call.1} parent=11 // pred_fallthru
        _
      // Predicated region
      $region25: #{tpu_custom_call.1} parent=11 // pred_check
        %p281 = pneg %p126
      $region26: #{tpu_custom_call.1} parent=11 // pred_check_branch
        %283 = sbr.rel (%p281) target = $region28
      $region27: #{tpu_custom_call.1} parent=11 // pred_region
        _
      $region28: #{tpu_custom_call.1} parent=11 // pred_fallthru
        _
      // Predicated region
      $region29: #{tpu_custom_call.1} parent=11 // pred_check
        %p284 = pneg %p147
      $region30: #{tpu_custom_call.1} parent=11 // pred_check_branch
        %286 = sbr.rel (%p284) target = $region32
      $region31: #{tpu_custom_call.1} parent=11 // pred_region
        _
      $region32: #{tpu_custom_call.1} parent=11 // pred_fallthru
        _
      // Predicated region
      $region33: #{tpu_custom_call.1} parent=11 // pred_check
        %p287 = pneg %p168
      $region34: #{tpu_custom_call.1} parent=11 // pred_check_branch
        %289 = sbr.rel (%p287) target = $region36
      $region35: #{tpu_custom_call.1} parent=11 // pred_region
        _
      $region36: #{tpu_custom_call.1} parent=11 // pred_fallthru
        _
      // Predicated region
      $region37: #{tpu_custom_call.1} parent=11 // pred_check
        %p290 = pneg %p189
      $region38: #{tpu_custom_call.1} parent=11 // pred_check_branch
        %292 = sbr.rel (%p290) target = $region40
      $region39: #{tpu_custom_call.1} parent=11 // pred_region
        _
      $region40: #{tpu_custom_call.1} parent=11 // pred_fallthru
        _
      // Predicated region
      $region41: #{tpu_custom_call.1} parent=11 // pred_check
        %p293 = pneg %p210
      $region42: #{tpu_custom_call.1} parent=11 // pred_check_branch
        %295 = sbr.rel (%p293) target = $region44
      $region43: #{tpu_custom_call.1} parent=11 // pred_region
        _
      $region44: #{tpu_custom_call.1} parent=11 // pred_fallthru
        _
      // Predicated region
      $region45: #{tpu_custom_call.1} parent=11 // pred_check
        %p296 = pneg %p231
      $region46: #{tpu_custom_call.1} parent=11 // pred_check_branch
        %298 = sbr.rel (%p296) target = $region48
      $region47: #{tpu_custom_call.1} parent=11 // pred_region
        _
      $region48: #{tpu_custom_call.1} parent=11 // pred_fallthru
        _
    $region12: #{tpu_custom_call.1} parent=5 // pred_fallthru
      _
    %p299 = scmp.lt.s32.totalorder %s16, 2
    // Predicated region
    $region49: #{tpu_custom_call.1} parent=5 // pred_check
      %p300 = pneg %p299
    $region50: #{tpu_custom_call.1} parent=5 // pred_check_branch
      %302 = sbr.rel (%p300) target = $region52
    $region51: #{tpu_custom_call.1} parent=5 // pred_region
      // Predicated region
      $region53: #{tpu_custom_call.1} parent=51 // pred_check
        %p303 = pneg %p36
      $region54: #{tpu_custom_call.1} parent=51 // pred_check_branch
        %305 = sbr.rel (%p303) target = $region56
      $region55: #{tpu_custom_call.1} parent=51 // pred_region
        %s306 = smul.u32 16, %s16
        %p307 = scmp.lt.s32.totalorder %s306, 31
        %s308 = scalar_select %p307, %s306, 31
        %s309 = smul.addr %s308, 8
        %s310 = scalar_lea.vmem %s0, %s309
        %s311 = smul.u32 16, %s16
      $region56: #{tpu_custom_call.1} parent=51 // pred_fallthru
        _
    $region52: #{tpu_custom_call.1} parent=5 // pred_fallthru
      _
    %p312 = scmp.le.s32.totalorder 1, %s16
    %p313 = scmp.lt.s32.totalorder %s16, 3
    %p314 = pnand %p312, %p313
    %p315 = pneg %p314
    // Predicated region
    $region57: #{tpu_custom_call.1} parent=5 // pred_check
      _
    $region58: #{tpu_custom_call.1} parent=5 // pred_check_branch
      %317 = sbr.rel (%p314) target = $region60
    $region59: #{tpu_custom_call.1} parent=5 // pred_region
      %s318 = ssub.s32 %s16, 1
      %s319 = smul.u32 16, %s21
      %p320 = scmp.lt.s32.totalorder %s319, 31
      %s321 = scalar_select %p320, %s319, 31
      %s322 = smul.addr %s321, 8
      %s323 = scalar_lea.vmem %s0, %s322
      %p324 = pneg %p42
      %p325 = pneg %p39
      %p326 = pneg %p63
      %p327 = pneg %p60
      %p328 = pneg %p84
      %p329 = pneg %p81
      %p330 = pneg %p105
      %p331 = pneg %p102
      %p332 = pneg %p126
      %p333 = pneg %p123
      %p334 = pneg %p147
      %p335 = pneg %p144
      %p336 = pneg %p168
      %p337 = pneg %p165
      %p338 = pneg %p189
      %p339 = pneg %p186
      %p340 = pneg %p210
      %p341 = pneg %p207
      %p342 = pneg %p231
      %p343 = pneg %p228
      %p344 = pneg %p257
      %p345 = pneg %p254
      %s346 = smul.u32 16, %s21
      %p347 = scmp.lt.s32.totalorder %s346, 31
      %s348 = scalar_select %p347, %s346, 31
      %s349 = smul.addr %s348, 8
      %s350 = scalar_lea.vmem %s10, %s349
      %s351 = smul.u32 16, %s21
      %p352 = scmp.lt.s32.totalorder %s351, 31
      %s353 = scalar_select %p352, %s351, 31
      %s354 = smul.addr %s353, 8
      %s355 = scalar_lea.vmem %s0, %s354
      %s356 = smul.u32 16, %s21
      %s357 = smul.u32 16, %s21
      %p358 = scmp.lt.s32.totalorder %s357, 31
      %s359 = scalar_select %p358, %s357, 31
      %s360 = smul.addr %s359, 8
      %s361 = scalar_lea.vmem %s10, %s360
      %s362 = smul.u32 16, %s21
      %v363 = vld [vmem:[%s355] sm:$0xff]
      %v364 = vld [vmem:[%s355 + $0x8] sm:$0xff]
      %v365 = vld [vmem:[%s355 + $0x10] sm:$0xff]
      %v366 = vld [vmem:[%s355 + $0x18] sm:$0xff]
      %v367 = vld [vmem:[%s355 + $0x20] sm:$0xff]
      %v368 = vld [vmem:[%s355 + $0x28] sm:$0xff]
      %v369 = vld [vmem:[%s355 + $0x30] sm:$0xff]
      %v370 = vld [vmem:[%s355 + $0x38] sm:$0xff]
      %v371 = vld [vmem:[%s355 + $0x40] sm:$0xff]
      %v372 = vld [vmem:[%s355 + $0x48] sm:$0xff]
      %v373 = vld [vmem:[%s355 + $0x50] sm:$0xff]
      %v374 = vld [vmem:[%s355 + $0x58] sm:$0xff]
      %v375 = vld [vmem:[%s355 + $0x60] sm:$0xff]
      %v376 = vld [vmem:[%s355 + $0x68] sm:$0xff]
      %v377 = vld [vmem:[%s355 + $0x70] sm:$0xff]
      %v378 = vld [vmem:[%s355 + $0x78] sm:$0xff]
      %v379 = vld [vmem:[%s1] sm:$0x1f]
      %v380 = vld [vmem:[%s2] sm:$0x1]
      %v382 = vlaneseq
      %v383 = vshrl.u32 %v382, 7
      %v384 = vsub.s32 0, %v383
      %v385 = vrot.slane %v380, %v384
      %vm387 = vcmask 39936
      %v389 = vsel %vm387, %v363, 0
      %v392 = vsel %vm387, %v364, 0
      %v395 = vsel %vm387, %v365, 0
      %v398 = vsel %vm387, %v366, 0
      %v401 = vsel %vm387, %v367, 0
      %v404 = vsel %vm387, %v368, 0
      %v407 = vsel %vm387, %v369, 0
      %v410 = vsel %vm387, %v370, 0
      %v413 = vsel %vm387, %v371, 0
      %v416 = vsel %vm387, %v372, 0
      %v419 = vsel %vm387, %v373, 0
      %v422 = vsel %vm387, %v374, 0
      %v425 = vsel %vm387, %v375, 0
      %v428 = vsel %vm387, %v376, 0
      %v431 = vsel %vm387, %v377, 0
      %v434 = vsel %vm387, %v378, 0
      %vm436 = vcmask 1044480
      %v438 = vsel %vm436, %v379, 0
      %440 = vmatprep.subr.mxu0 0.0
      %441 = vmatpush1.msra.mxu0 %v438
      %442 = vmatprep.subr.mxu0 0.0
      %443 = vmatpush1.msra.mxu0 0.0
      %444 = vmatprep.subr.mxu0 0.0
      %445 = vmatpush1.msra.mxu0 0.0
      %446 = vmatprep.subr.mxu0 0.0
      %447 = vmatpush1.msra.mxu0 0.0
      %448 = vmatprep.subr.mxu0 0.0
      %449 = vmatpush1.msra.mxu0 0.0
      %450 = vmatprep.subr.mxu0 0.0
      %451 = vmatpush1.msra.mxu0 0.0
      %452 = vmatprep.subr.mxu0 0.0
      %453 = vmatpush1.msra.mxu0 0.0
      %454 = vmatprep.subr.mxu0 0.0
      %455 = vmatpush1.msra.mxu0 0.0
      %456 = vmatprep.subr.mxu0 0.0
      %457 = vmatpush1.msra.mxu0 0.0
      %458 = vmatprep.subr.mxu0 0.0
      %459 = vmatpush1.msra.mxu0 0.0
      %460 = vmatprep.subr.mxu0 0.0
      %461 = vmatpush1.msra.mxu0 0.0
      %462 = vmatprep.subr.mxu0 0.0
      %463 = vmatpush1.msra.mxu0 0.0
      %464 = vmatprep.subr.mxu0 0.0
      %465 = vmatpush1.msra.mxu0 0.0
      %466 = vmatprep.subr.mxu0 0.0
      %467 = vmatpush1.msra.mxu0 0.0
      %468 = vmatprep.subr.mxu0 0.0
      %469 = vmatpush1.msra.mxu0 0.0
      %470 = vmatprep.subr.mxu0 0.0
      %471 = vmatpush1.msra.mxu0 0.0
      %472 = vmatprep.subr.mxu0 0.0
      %473 = vmatpush1.msra.mxu0 0.0
      %474 = vmatprep.subr.mxu0 0.0
      %475 = vmatpush1.msra.mxu0 0.0
      %476 = vmatprep.subr.mxu0 0.0
      %477 = vmatpush1.msra.mxu0 0.0
      %478 = vmatprep.subr.mxu0 0.0
      %479 = vmatpush1.msra.mxu0 0.0
      %480 = vmatprep.subr.mxu0 0.0
      %481 = vmatpush1.msra.mxu0 0.0
      %482 = vmatprep.subr.mxu0 0.0
      %483 = vmatpush1.msra.mxu0 0.0
      %484 = vmatprep.subr.mxu0 0.0
      %485 = vmatpush1.msra.mxu0 0.0
      %486 = vmatprep.subr.mxu0 0.0
      %487 = vmatpush1.msra.mxu0 0.0
      %488 = vmatprep.subr.mxu0 0.0
      %489 = vmatpush1.msra.mxu0 0.0
      %490 = vmatprep.subr.mxu0 0.0
      %491 = vmatpush1.msra.mxu0 0.0
      %492 = vmatprep.subr.mxu0 0.0
      %493 = vmatpush1.msra.mxu0 0.0
      %494 = vmatprep.subr.mxu0 0.0
      %495 = vmatpush1.msra.mxu0 0.0
      %496 = vmatprep.subr.mxu0 0.0
      %497 = vmatpush1.msra.mxu0 0.0
      %498 = vmatprep.subr.mxu0 0.0
      %499 = vmatpush1.msra.mxu0 0.0
      %500 = vmatprep.subr.mxu0 0.0
      %501 = vmatpush1.msra.mxu0 0.0
      %502 = vmatprep.subr.mxu0 0.0
      %503 = vmatpush1.msra.mxu0 0.0
      %504 = vmatprep.mubr.f32.mxu0 0.0
      %505 = vmatmul.mubr.f32.gmra.mrb[0].mxu0 %v389
      %v506 = vpop.f32.mrb[0].mxu0
      %v507 = vadd.f32 %v385, %v506
      %v508 = vpop.f32.mrb[0].mxu0
      %509 = vmatprep.mubr.f32.mxu0 0.0
      %510 = vmatmul.mubr.f32.gmra.mrb[0].mxu0 %v392
      %v511 = vpop.f32.mrb[0].mxu0
      %v512 = vadd.f32 %v385, %v511
      %v513 = vpop.f32.mrb[0].mxu0
      %514 = vmatprep.mubr.f32.mxu0 0.0
      %515 = vmatmul.mubr.f32.gmra.mrb[0].mxu0 %v395
      %v516 = vpop.f32.mrb[0].mxu0
      %v517 = vadd.f32 %v385, %v516
      %v518 = vpop.f32.mrb[0].mxu0
      %519 = vmatprep.mubr.f32.mxu0 0.0
      %520 = vmatmul.mubr.f32.gmra.mrb[0].mxu0 %v398
      %v521 = vpop.f32.mrb[0].mxu0
      %v522 = vadd.f32 %v385, %v521
      %v523 = vpop.f32.mrb[0].mxu0
      %524 = vmatprep.mubr.f32.mxu0 0.0
      %525 = vmatmul.mubr.f32.gmra.mrb[0].mxu0 %v401
      %v526 = vpop.f32.mrb[0].mxu0
      %v527 = vadd.f32 %v385, %v526
      %v528 = vpop.f32.mrb[0].mxu0
      %529 = vmatprep.mubr.f32.mxu0 0.0
      %530 = vmatmul.mubr.f32.gmra.mrb[0].mxu0 %v404
      %v531 = vpop.f32.mrb[0].mxu0
      %v532 = vadd.f32 %v385, %v531
      %v533 = vpop.f32.mrb[0].mxu0
      %534 = vmatprep.mubr.f32.mxu0 0.0
      %535 = vmatmul.mubr.f32.gmra.mrb[0].mxu0 %v407
      %v536 = vpop.f32.mrb[0].mxu0
      %v537 = vadd.f32 %v385, %v536
      %v538 = vpop.f32.mrb[0].mxu0
      %539 = vmatprep.mubr.f32.mxu0 0.0
      %540 = vmatmul.mubr.f32.gmra.mrb[0].mxu0 %v410
      %v541 = vpop.f32.mrb[0].mxu0
      %v542 = vadd.f32 %v385, %v541
      %v543 = vpop.f32.mrb[0].mxu0
      %544 = vmatprep.mubr.f32.mxu0 0.0
      %545 = vmatmul.mubr.f32.gmra.mrb[0].mxu0 %v413
      %v546 = vpop.f32.mrb[0].mxu0
      %v547 = vadd.f32 %v385, %v546
      %v548 = vpop.f32.mrb[0].mxu0
      %549 = vmatprep.mubr.f32.mxu0 0.0
      %550 = vmatmul.mubr.f32.gmra.mrb[0].mxu0 %v416
      %v551 = vpop.f32.mrb[0].mxu0
      %v552 = vadd.f32 %v385, %v551
      %v553 = vpop.f32.mrb[0].mxu0
      %554 = vmatprep.mubr.f32.mxu0 0.0
      %555 = vmatmul.mubr.f32.gmra.mrb[0].mxu0 %v419
      %v556 = vpop.f32.mrb[0].mxu0
      %v557 = vadd.f32 %v385, %v556
      %v558 = vpop.f32.mrb[0].mxu0
      %559 = vmatprep.mubr.f32.mxu0 0.0
      %560 = vmatmul.mubr.f32.gmra.mrb[0].mxu0 %v422
      %v561 = vpop.f32.mrb[0].mxu0
      %v562 = vadd.f32 %v385, %v561
      %v563 = vpop.f32.mrb[0].mxu0
      %564 = vmatprep.mubr.f32.mxu0 0.0
      %565 = vmatmul.mubr.f32.gmra.mrb[0].mxu0 %v425
      %v566 = vpop.f32.mrb[0].mxu0
      %v567 = vadd.f32 %v385, %v566
      %v568 = vpop.f32.mrb[0].mxu0
      %569 = vmatprep.mubr.f32.mxu0 0.0
      %570 = vmatmul.mubr.f32.gmra.mrb[0].mxu0 %v428
      %v571 = vpop.f32.mrb[0].mxu0
      %v572 = vadd.f32 %v385, %v571
      %v573 = vpop.f32.mrb[0].mxu0
      %574 = vmatprep.mubr.f32.mxu0 0.0
      %575 = vmatmul.mubr.f32.gmra.mrb[0].mxu0 %v431
      %v576 = vpop.f32.mrb[0].mxu0
      %v577 = vadd.f32 %v385, %v576
      %v578 = vpop.f32.mrb[0].mxu0
      %579 = vmatprep.mubr.f32.mxu0 0.0
      %580 = vmatmul.mubr.f32.gmra.mrb[0].mxu0 %v434
      %v581 = vpop.f32.mrb[0].mxu0
      %v582 = vadd.f32 %v385, %v581
      %v583 = vpop.f32.mrb[0].mxu0
      %584 = vdwg.mxu0
      %v585 = vmul.f32 %v507, 100.0
      %v586 = vmul.f32 %v512, 100.0
      %v587 = vmul.f32 %v517, 100.0
      %v588 = vmul.f32 %v522, 100.0
      %v589 = vmul.f32 %v527, 100.0
      %v590 = vmul.f32 %v532, 100.0
      %v591 = vmul.f32 %v537, 100.0
      %v592 = vmul.f32 %v542, 100.0
      %v593 = vmul.f32 %v547, 100.0
      %v594 = vmul.f32 %v552, 100.0
      %v595 = vmul.f32 %v557, 100.0
      %v596 = vmul.f32 %v562, 100.0
      %v597 = vmul.f32 %v567, 100.0
      %v598 = vmul.f32 %v572, 100.0
      %v599 = vmul.f32 %v577, 100.0
      %v600 = vmul.f32 %v582, 100.0
      %v601 = vmin.f32 %v585, 30.0
      %v602 = vmin.f32 %v586, 30.0
      %v603 = vmin.f32 %v587, 30.0
      %v604 = vmin.f32 %v588, 30.0
      %v605 = vmin.f32 %v589, 30.0
      %v606 = vmin.f32 %v590, 30.0
      %v607 = vmin.f32 %v591, 30.0
      %v608 = vmin.f32 %v592, 30.0
      %v609 = vmin.f32 %v593, 30.0
      %v610 = vmin.f32 %v594, 30.0
      %v611 = vmin.f32 %v595, 30.0
      %v612 = vmin.f32 %v596, 30.0
      %v613 = vmin.f32 %v597, 30.0
      %v614 = vmin.f32 %v598, 30.0
      %v615 = vmin.f32 %v599, 30.0
      %v616 = vmin.f32 %v600, 30.0
      %vm617 = vcmp.gt.f32.partialorder %v585, 20.0
      %vm618 = vcmp.gt.f32.partialorder %v586, 20.0
      %vm619 = vcmp.gt.f32.partialorder %v587, 20.0
      %vm620 = vcmp.gt.f32.partialorder %v588, 20.0
      %vm621 = vcmp.gt.f32.partialorder %v589, 20.0
      %vm622 = vcmp.gt.f32.partialorder %v590, 20.0
      %vm623 = vcmp.gt.f32.partialorder %v591, 20.0
      %vm624 = vcmp.gt.f32.partialorder %v592, 20.0
      %vm625 = vcmp.gt.f32.partialorder %v593, 20.0
      %vm626 = vcmp.gt.f32.partialorder %v594, 20.0
      %vm627 = vcmp.gt.f32.partialorder %v595, 20.0
      %vm628 = vcmp.gt.f32.partialorder %v596, 20.0
      %vm629 = vcmp.gt.f32.partialorder %v597, 20.0
      %vm630 = vcmp.gt.f32.partialorder %v598, 20.0
      %vm631 = vcmp.gt.f32.partialorder %v599, 20.0
      %vm632 = vcmp.gt.f32.partialorder %v600, 20.0
      %v633 = vmul.f32 %v601, 1.442695
      %v634 = vpow.pop %v633
      %v635 = vmul.f32 %v602, 1.442695
      %v636 = vpow.pop %v635
      %v637 = vmul.f32 %v603, 1.442695
      %v638 = vpow.pop %v637
      %v639 = vmul.f32 %v604, 1.442695
      %v640 = vpow.pop %v639
      %v641 = vmul.f32 %v605, 1.442695
      %v642 = vpow.pop %v641
      %v643 = vmul.f32 %v606, 1.442695
      %v644 = vpow.pop %v643
      %v645 = vmul.f32 %v607, 1.442695
      %v646 = vpow.pop %v645
      %v647 = vmul.f32 %v608, 1.442695
      %v648 = vpow.pop %v647
      %v649 = vmul.f32 %v609, 1.442695
      %v650 = vpow.pop %v649
      %v651 = vmul.f32 %v610, 1.442695
      %v652 = vpow.pop %v651
      %v653 = vmul.f32 %v611, 1.442695
      %v654 = vpow.pop %v653
      %v655 = vmul.f32 %v612, 1.442695
      %v656 = vpow.pop %v655
      %v657 = vmul.f32 %v613, 1.442695
      %v658 = vpow.pop %v657
      %v659 = vmul.f32 %v614, 1.442695
      %v660 = vpow.pop %v659
      %v661 = vmul.f32 %v615, 1.442695
      %v662 = vpow.pop %v661
      %v663 = vmul.f32 %v616, 1.442695
      %v664 = vpow.pop %v663
      %v665 = vadd.f32 %v634, 1.0
      %v666 = vlog2.pop %v665
      %v667 = vmul.f32 %v666, 0.6931472
      %v668 = vmul.f32 -0.5, %v634
      %v669 = vadd.f32 %v668, 1.0
      %v670 = vmul.f32 %v669, %v634
      %v671 = vand.u32 2147483647, %v634
      %vm672 = vcmp.lt.f32.partialorder %v671, 0.0004427343
      %v673 = vsel %vm672, %v670, %v667
      %v674 = vadd.f32 %v636, 1.0
      %v675 = vlog2.pop %v674
      %v676 = vmul.f32 %v675, 0.6931472
      %v677 = vmul.f32 -0.5, %v636
      %v678 = vadd.f32 %v677, 1.0
      %v679 = vmul.f32 %v678, %v636
      %v680 = vand.u32 2147483647, %v636
      %vm681 = vcmp.lt.f32.partialorder %v680, 0.0004427343
      %v682 = vsel %vm681, %v679, %v676
      %v683 = vadd.f32 %v638, 1.0
      %v684 = vlog2.pop %v683
      %v685 = vmul.f32 %v684, 0.6931472
      %v686 = vmul.f32 -0.5, %v638
      %v687 = vadd.f32 %v686, 1.0
      %v688 = vmul.f32 %v687, %v638
      %v689 = vand.u32 2147483647, %v638
      %vm690 = vcmp.lt.f32.partialorder %v689, 0.0004427343
      %v691 = vsel %vm690, %v688, %v685
      %v692 = vadd.f32 %v640, 1.0
      %v693 = vlog2.pop %v692
      %v694 = vmul.f32 %v693, 0.6931472
      %v695 = vmul.f32 -0.5, %v640
      %v696 = vadd.f32 %v695, 1.0
      %v697 = vmul.f32 %v696, %v640
      %v698 = vand.u32 2147483647, %v640
      %vm699 = vcmp.lt.f32.partialorder %v698, 0.0004427343
      %v700 = vsel %vm699, %v697, %v694
      %v701 = vadd.f32 %v642, 1.0
      %v702 = vlog2.pop %v701
      %v703 = vmul.f32 %v702, 0.6931472
      %v704 = vmul.f32 -0.5, %v642
      %v705 = vadd.f32 %v704, 1.0
      %v706 = vmul.f32 %v705, %v642
      %v707 = vand.u32 2147483647, %v642
      %vm708 = vcmp.lt.f32.partialorder %v707, 0.0004427343
      %v709 = vsel %vm708, %v706, %v703
      %v710 = vadd.f32 %v644, 1.0
      %v711 = vlog2.pop %v710
      %v712 = vmul.f32 %v711, 0.6931472
      %v713 = vmul.f32 -0.5, %v644
      %v714 = vadd.f32 %v713, 1.0
      %v715 = vmul.f32 %v714, %v644
      %v716 = vand.u32 2147483647, %v644
      %vm717 = vcmp.lt.f32.partialorder %v716, 0.0004427343
      %v718 = vsel %vm717, %v715, %v712
      %v719 = vadd.f32 %v646, 1.0
      %v720 = vlog2.pop %v719
      %v721 = vmul.f32 %v720, 0.6931472
      %v722 = vmul.f32 -0.5, %v646
      %v723 = vadd.f32 %v722, 1.0
      %v724 = vmul.f32 %v723, %v646
      %v725 = vand.u32 2147483647, %v646
      %vm726 = vcmp.lt.f32.partialorder %v725, 0.0004427343
      %v727 = vsel %vm726, %v724, %v721
      %v728 = vadd.f32 %v648, 1.0
      %v729 = vlog2.pop %v728
      %v730 = vmul.f32 %v729, 0.6931472
      %v731 = vmul.f32 -0.5, %v648
      %v732 = vadd.f32 %v731, 1.0
      %v733 = vmul.f32 %v732, %v648
      %v734 = vand.u32 2147483647, %v648
      %vm735 = vcmp.lt.f32.partialorder %v734, 0.0004427343
      %v736 = vsel %vm735, %v733, %v730
      %v737 = vadd.f32 %v650, 1.0
      %v738 = vlog2.pop %v737
      %v739 = vmul.f32 %v738, 0.6931472
      %v740 = vmul.f32 -0.5, %v650
      %v741 = vadd.f32 %v740, 1.0
      %v742 = vmul.f32 %v741, %v650
      %v743 = vand.u32 2147483647, %v650
      %vm744 = vcmp.lt.f32.partialorder %v743, 0.0004427343
      %v745 = vsel %vm744, %v742, %v739
      %v746 = vadd.f32 %v652, 1.0
      %v747 = vlog2.pop %v746
      %v748 = vmul.f32 %v747, 0.6931472
      %v749 = vmul.f32 -0.5, %v652
      %v750 = vadd.f32 %v749, 1.0
      %v751 = vmul.f32 %v750, %v652
      %v752 = vand.u32 2147483647, %v652
      %vm753 = vcmp.lt.f32.partialorder %v752, 0.0004427343
      %v754 = vsel %vm753, %v751, %v748
      %v755 = vadd.f32 %v654, 1.0
      %v756 = vlog2.pop %v755
      %v757 = vmul.f32 %v756, 0.6931472
      %v758 = vmul.f32 -0.5, %v654
      %v759 = vadd.f32 %v758, 1.0
      %v760 = vmul.f32 %v759, %v654
      %v761 = vand.u32 2147483647, %v654
      %vm762 = vcmp.lt.f32.partialorder %v761, 0.0004427343
      %v763 = vsel %vm762, %v760, %v757
      %v764 = vadd.f32 %v656, 1.0
      %v765 = vlog2.pop %v764
      %v766 = vmul.f32 %v765, 0.6931472
      %v767 = vmul.f32 -0.5, %v656
      %v768 = vadd.f32 %v767, 1.0
      %v769 = vmul.f32 %v768, %v656
      %v770 = vand.u32 2147483647, %v656
      %vm771 = vcmp.lt.f32.partialorder %v770, 0.0004427343
      %v772 = vsel %vm771, %v769, %v766
      %v773 = vadd.f32 %v658, 1.0
      %v774 = vlog2.pop %v773
      %v775 = vmul.f32 %v774, 0.6931472
      %v776 = vmul.f32 -0.5, %v658
      %v777 = vadd.f32 %v776, 1.0
      %v778 = vmul.f32 %v777, %v658
      %v779 = vand.u32 2147483647, %v658
      %vm780 = vcmp.lt.f32.partialorder %v779, 0.0004427343
      %v781 = vsel %vm780, %v778, %v775
      %v782 = vadd.f32 %v660, 1.0
      %v783 = vlog2.pop %v782
      %v784 = vmul.f32 %v783, 0.6931472
      %v785 = vmul.f32 -0.5, %v660
      %v786 = vadd.f32 %v785, 1.0
      %v787 = vmul.f32 %v786, %v660
      %v788 = vand.u32 2147483647, %v660
      %vm789 = vcmp.lt.f32.partialorder %v788, 0.0004427343
      %v790 = vsel %vm789, %v787, %v784
      %v791 = vadd.f32 %v662, 1.0
      %v792 = vlog2.pop %v791
      %v793 = vmul.f32 %v792, 0.6931472
      %v794 = vmul.f32 -0.5, %v662
      %v795 = vadd.f32 %v794, 1.0
      %v796 = vmul.f32 %v795, %v662
      %v797 = vand.u32 2147483647, %v662
      %vm798 = vcmp.lt.f32.partialorder %v797, 0.0004427343
      %v799 = vsel %vm798, %v796, %v793
      %v800 = vadd.f32 %v664, 1.0
      %v801 = vlog2.pop %v800
      %v802 = vmul.f32 %v801, 0.6931472
      %v803 = vmul.f32 -0.5, %v664
      %v804 = vadd.f32 %v803, 1.0
      %v805 = vmul.f32 %v804, %v664
      %v806 = vand.u32 2147483647, %v664
      %vm807 = vcmp.lt.f32.partialorder %v806, 0.0004427343
      %v808 = vsel %vm807, %v805, %v802
      %v809 = vmul.f32 %v673, 0.01
      %v810 = vmul.f32 %v682, 0.01
      %v811 = vmul.f32 %v691, 0.01
      %v812 = vmul.f32 %v700, 0.01
      %v813 = vmul.f32 %v709, 0.01
      %v814 = vmul.f32 %v718, 0.01
      %v815 = vmul.f32 %v727, 0.01
      %v816 = vmul.f32 %v736, 0.01
      %v817 = vmul.f32 %v745, 0.01
      %v818 = vmul.f32 %v754, 0.01
      %v819 = vmul.f32 %v763, 0.01
      %v820 = vmul.f32 %v772, 0.01
      %v821 = vmul.f32 %v781, 0.01
      %v822 = vmul.f32 %v790, 0.01
      %v823 = vmul.f32 %v799, 0.01
      %v824 = vmul.f32 %v808, 0.01
      %v825 = vsel %vm617, %v507, %v809
      %v826 = vsel %vm618, %v512, %v810
      %v827 = vsel %vm619, %v517, %v811
      %v828 = vsel %vm620, %v522, %v812
      %v829 = vsel %vm621, %v527, %v813
      %v830 = vsel %vm622, %v532, %v814
      %v831 = vsel %vm623, %v537, %v815
      %v832 = vsel %vm624, %v542, %v816
      %v833 = vsel %vm625, %v547, %v817
      %v834 = vsel %vm626, %v552, %v818
      %v835 = vsel %vm627, %v557, %v819
      %v836 = vsel %vm628, %v562, %v820
      %v837 = vsel %vm629, %v567, %v821
      %v838 = vsel %vm630, %v572, %v822
      %v839 = vsel %vm631, %v577, %v823
      %v840 = vsel %vm632, %v582, %v824
      %v841 = vld [vmem:[%s3] sm:$0xff]
      %v842 = vld [vmem:[%s3 + $0x8] sm:$0xff]
      %v843 = vld [vmem:[%s3 + $0x10] sm:$0xff]
      %v844 = vld [vmem:[%s3 + $0x18] sm:$0xff]
      %v845 = vld [vmem:[%s3 + $0x20] sm:$0xff]
      %v846 = vld [vmem:[%s3 + $0x28] sm:$0xff]
      %v847 = vld [vmem:[%s3 + $0x30] sm:$0xff]
      %v848 = vld [vmem:[%s3 + $0x38] sm:$0xff]
      %v849 = vld [vmem:[%s4] sm:$0x1]
      %v851 = vlaneseq
      %v852 = vshrl.u32 %v851, 7
      %v853 = vsub.s32 0, %v852
      %v854 = vrot.slane %v849, %v853
      %vm856 = vcmask 523264
      %v858 = vsel %vm856, %v825, 0
      %v861 = vsel %vm856, %v826, 0
      %v864 = vsel %vm856, %v827, 0
      %v867 = vsel %vm856, %v828, 0
      %v870 = vsel %vm856, %v829, 0
      %v873 = vsel %vm856, %v830, 0
      %v876 = vsel %vm856, %v831, 0
      %v879 = vsel %vm856, %v832, 0
      %v882 = vsel %vm856, %v833, 0
      %v885 = vsel %vm856, %v834, 0
      %v888 = vsel %vm856, %v835, 0
      %v891 = vsel %vm856, %v836, 0
      %v894 = vsel %vm856, %v837, 0
      %v897 = vsel %vm856, %v838, 0
      %v900 = vsel %vm856, %v839, 0
      %v903 = vsel %vm856, %v840, 0
      %905 = vmatprep.subr.mxu0 0.0
      %906 = vmatpush1.msra.mxu0 %v841
      %907 = vmatprep.subr.mxu0 0.0
      %908 = vmatpush1.msra.mxu0 %v842
      %909 = vmatprep.subr.mxu0 0.0
      %910 = vmatpush1.msra.mxu0 %v843
      %911 = vmatprep.subr.mxu0 0.0
      %912 = vmatpush1.msra.mxu0 %v844
      %913 = vmatprep.subr.mxu0 0.0
      %914 = vmatpush1.msra.mxu0 %v845
      %915 = vmatprep.subr.mxu0 0.0
      %916 = vmatpush1.msra.mxu0 %v846
      %917 = vmatprep.subr.mxu0 0.0
      %918 = vmatpush1.msra.mxu0 %v847
      %919 = vmatprep.subr.mxu0 0.0
      %920 = vmatpush1.msra.mxu0 %v848
      %921 = vmatprep.subr.mxu0 0.0
      %922 = vmatpush1.msra.mxu0 0.0
      %923 = vmatprep.subr.mxu0 0.0
      %924 = vmatpush1.msra.mxu0 0.0
      %925 = vmatprep.subr.mxu0 0.0
      %926 = vmatpush1.msra.mxu0 0.0
      %927 = vmatprep.subr.mxu0 0.0
      %928 = vmatpush1.msra.mxu0 0.0
      %929 = vmatprep.subr.mxu0 0.0
      %930 = vmatpush1.msra.mxu0 0.0
      %931 = vmatprep.subr.mxu0 0.0
      %932 = vmatpush1.msra.mxu0 0.0
      %933 = vmatprep.subr.mxu0 0.0
      %934 = vmatpush1.msra.mxu0 0.0
      %935 = vmatprep.subr.mxu0 0.0
      %936 = vmatpush1.msra.mxu0 0.0
      %937 = vmatprep.subr.mxu0 0.0
      %938 = vmatpush1.msra.mxu0 0.0
      %939 = vmatprep.subr.mxu0 0.0
      %940 = vmatpush1.msra.mxu0 0.0
      %941 = vmatprep.subr.mxu0 0.0
      %942 = vmatpush1.msra.mxu0 0.0
      %943 = vmatprep.subr.mxu0 0.0
      %944 = vmatpush1.msra.mxu0 0.0
      %945 = vmatprep.subr.mxu0 0.0
      %946 = vmatpush1.msra.mxu0 0.0
      %947 = vmatprep.subr.mxu0 0.0
      %948 = vmatpush1.msra.mxu0 0.0
      %949 = vmatprep.subr.mxu0 0.0
      %950 = vmatpush1.msra.mxu0 0.0
      %951 = vmatprep.subr.mxu0 0.0
      %952 = vmatpush1.msra.mxu0 0.0
      %953 = vmatprep.subr.mxu0 0.0
      %954 = vmatpush1.msra.mxu0 0.0
      %955 = vmatprep.subr.mxu0 0.0
      %956 = vmatpush1.msra.mxu0 0.0
      %957 = vmatprep.subr.mxu0 0.0
      %958 = vmatpush1.msra.mxu0 0.0
      %959 = vmatprep.subr.mxu0 0.0
      %960 = vmatpush1.msra.mxu0 0.0
      %961 = vmatprep.subr.mxu0 0.0
      %962 = vmatpush1.msra.mxu0 0.0
      %963 = vmatprep.subr.mxu0 0.0
      %964 = vmatpush1.msra.mxu0 0.0
      %965 = vmatprep.subr.mxu0 0.0
      %966 = vmatpush1.msra.mxu0 0.0
      %967 = vmatprep.subr.mxu0 0.0
      %968 = vmatpush1.msra.mxu0 0.0
      %969 = vmatprep.mubr.f32.mxu0 0.0
      %970 = vmatmul.mubr.f32.gmra.mrb[0].mxu0 %v858
      %v971 = vpop.f32.mrb[0].mxu0
      %v972 = vadd.f32 %v854, %v971
      %v973 = vpop.f32.mrb[0].mxu0
      %974 = vmatprep.mubr.f32.mxu0 0.0
      %975 = vmatmul.mubr.f32.gmra.mrb[0].mxu0 %v861
      %v976 = vpop.f32.mrb[0].mxu0
      %v977 = vadd.f32 %v854, %v976
      %v978 = vpop.f32.mrb[0].mxu0
      %979 = vmatprep.mubr.f32.mxu0 0.0
      %980 = vmatmul.mubr.f32.gmra.mrb[0].mxu0 %v864
      %v981 = vpop.f32.mrb[0].mxu0
      %v982 = vadd.f32 %v854, %v981
      %v983 = vpop.f32.mrb[0].mxu0
      %984 = vmatprep.mubr.f32.mxu0 0.0
      %985 = vmatmul.mubr.f32.gmra.mrb[0].mxu0 %v867
      %v986 = vpop.f32.mrb[0].mxu0
      %v987 = vadd.f32 %v854, %v986
      %v988 = vpop.f32.mrb[0].mxu0
      %989 = vmatprep.mubr.f32.mxu0 0.0
      %990 = vmatmul.mubr.f32.gmra.mrb[0].mxu0 %v870
      %v991 = vpop.f32.mrb[0].mxu0
      %v992 = vadd.f32 %v854, %v991
      %v993 = vpop.f32.mrb[0].mxu0
      %994 = vmatprep.mubr.f32.mxu0 0.0
      %995 = vmatmul.mubr.f32.gmra.mrb[0].mxu0 %v873
      %v996 = vpop.f32.mrb[0].mxu0
      %v997 = vadd.f32 %v854, %v996
      %v998 = vpop.f32.mrb[0].mxu0
      %999 = vmatprep.mubr.f32.mxu0 0.0
      %1000 = vmatmul.mubr.f32.gmra.mrb[0].mxu0 %v876
      %v1001 = vpop.f32.mrb[0].mxu0
      %v1002 = vadd.f32 %v854, %v1001
      %v1003 = vpop.f32.mrb[0].mxu0
      %1004 = vmatprep.mubr.f32.mxu0 0.0
      %1005 = vmatmul.mubr.f32.gmra.mrb[0].mxu0 %v879
      %v1006 = vpop.f32.mrb[0].mxu0
      %v1007 = vadd.f32 %v854, %v1006
      %v1008 = vpop.f32.mrb[0].mxu0
      %1009 = vmatprep.mubr.f32.mxu0 0.0
      %1010 = vmatmul.mubr.f32.gmra.mrb[0].mxu0 %v882
      %v1011 = vpop.f32.mrb[0].mxu0
      %v1012 = vadd.f32 %v854, %v1011
      %v1013 = vpop.f32.mrb[0].mxu0
      %1014 = vmatprep.mubr.f32.mxu0 0.0
      %1015 = vmatmul.mubr.f32.gmra.mrb[0].mxu0 %v885
      %v1016 = vpop.f32.mrb[0].mxu0
      %v1017 = vadd.f32 %v854, %v1016
      %v1018 = vpop.f32.mrb[0].mxu0
      %1019 = vmatprep.mubr.f32.mxu0 0.0
      %1020 = vmatmul.mubr.f32.gmra.mrb[0].mxu0 %v888
      %v1021 = vpop.f32.mrb[0].mxu0
      %v1022 = vadd.f32 %v854, %v1021
      %v1023 = vpop.f32.mrb[0].mxu0
      %1024 = vmatprep.mubr.f32.mxu0 0.0
      %1025 = vmatmul.mubr.f32.gmra.mrb[0].mxu0 %v891
      %v1026 = vpop.f32.mrb[0].mxu0
      %v1027 = vadd.f32 %v854, %v1026
      %v1028 = vpop.f32.mrb[0].mxu0
      %1029 = vmatprep.mubr.f32.mxu0 0.0
      %1030 = vmatmul.mubr.f32.gmra.mrb[0].mxu0 %v894
      %v1031 = vpop.f32.mrb[0].mxu0
      %v1032 = vadd.f32 %v854, %v1031
      %v1033 = vpop.f32.mrb[0].mxu0
      %1034 = vmatprep.mubr.f32.mxu0 0.0
      %1035 = vmatmul.mubr.f32.gmra.mrb[0].mxu0 %v897
      %v1036 = vpop.f32.mrb[0].mxu0
      %v1037 = vadd.f32 %v854, %v1036
      %v1038 = vpop.f32.mrb[0].mxu0
      %1039 = vmatprep.mubr.f32.mxu0 0.0
      %1040 = vmatmul.mubr.f32.gmra.mrb[0].mxu0 %v900
      %v1041 = vpop.f32.mrb[0].mxu0
      %v1042 = vadd.f32 %v854, %v1041
      %v1043 = vpop.f32.mrb[0].mxu0
      %1044 = vmatprep.mubr.f32.mxu0 0.0
      %1045 = vmatmul.mubr.f32.gmra.mrb[0].mxu0 %v903
      %v1046 = vpop.f32.mrb[0].mxu0
      %v1047 = vadd.f32 %v854, %v1046
      %v1048 = vpop.f32.mrb[0].mxu0
      %1049 = vdwg.mxu0
      %v1050 = vmul.f32 %v972, 100.0
      %v1051 = vmul.f32 %v977, 100.0
      %v1052 = vmul.f32 %v982, 100.0
      %v1053 = vmul.f32 %v987, 100.0
      %v1054 = vmul.f32 %v992, 100.0
      %v1055 = vmul.f32 %v997, 100.0
      %v1056 = vmul.f32 %v1002, 100.0
      %v1057 = vmul.f32 %v1007, 100.0
      %v1058 = vmul.f32 %v1012, 100.0
      %v1059 = vmul.f32 %v1017, 100.0
      %v1060 = vmul.f32 %v1022, 100.0
      %v1061 = vmul.f32 %v1027, 100.0
      %v1062 = vmul.f32 %v1032, 100.0
      %v1063 = vmul.f32 %v1037, 100.0
      %v1064 = vmul.f32 %v1042, 100.0
      %v1065 = vmul.f32 %v1047, 100.0
      %v1066 = vmin.f32 %v1050, 30.0
      %v1067 = vmin.f32 %v1051, 30.0
      %v1068 = vmin.f32 %v1052, 30.0
      %v1069 = vmin.f32 %v1053, 30.0
      %v1070 = vmin.f32 %v1054, 30.0
      %v1071 = vmin.f32 %v1055, 30.0
      %v1072 = vmin.f32 %v1056, 30.0
      %v1073 = vmin.f32 %v1057, 30.0
      %v1074 = vmin.f32 %v1058, 30.0
      %v1075 = vmin.f32 %v1059, 30.0
      %v1076 = vmin.f32 %v1060, 30.0
      %v1077 = vmin.f32 %v1061, 30.0
      %v1078 = vmin.f32 %v1062, 30.0
      %v1079 = vmin.f32 %v1063, 30.0
      %v1080 = vmin.f32 %v1064, 30.0
      %v1081 = vmin.f32 %v1065, 30.0
      %vm1082 = vcmp.gt.f32.partialorder %v1050, 20.0
      %vm1083 = vcmp.gt.f32.partialorder %v1051, 20.0
      %vm1084 = vcmp.gt.f32.partialorder %v1052, 20.0
      %vm1085 = vcmp.gt.f32.partialorder %v1053, 20.0
      %vm1086 = vcmp.gt.f32.partialorder %v1054, 20.0
      %vm1087 = vcmp.gt.f32.partialorder %v1055, 20.0
      %vm1088 = vcmp.gt.f32.partialorder %v1056, 20.0
      %vm1089 = vcmp.gt.f32.partialorder %v1057, 20.0
      %vm1090 = vcmp.gt.f32.partialorder %v1058, 20.0
      %vm1091 = vcmp.gt.f32.partialorder %v1059, 20.0
      %vm1092 = vcmp.gt.f32.partialorder %v1060, 20.0
      %vm1093 = vcmp.gt.f32.partialorder %v1061, 20.0
      %vm1094 = vcmp.gt.f32.partialorder %v1062, 20.0
      %vm1095 = vcmp.gt.f32.partialorder %v1063, 20.0
      %vm1096 = vcmp.gt.f32.partialorder %v1064, 20.0
      %vm1097 = vcmp.gt.f32.partialorder %v1065, 20.0
      %v1098 = vmul.f32 %v1066, 1.442695
      %v1099 = vpow.pop %v1098
      %v1100 = vmul.f32 %v1067, 1.442695
      %v1101 = vpow.pop %v1100
      %v1102 = vmul.f32 %v1068, 1.442695
      %v1103 = vpow.pop %v1102
      %v1104 = vmul.f32 %v1069, 1.442695
      %v1105 = vpow.pop %v1104
      %v1106 = vmul.f32 %v1070, 1.442695
      %v1107 = vpow.pop %v1106
      %v1108 = vmul.f32 %v1071, 1.442695
      %v1109 = vpow.pop %v1108
      %v1110 = vmul.f32 %v1072, 1.442695
      %v1111 = vpow.pop %v1110
      %v1112 = vmul.f32 %v1073, 1.442695
      %v1113 = vpow.pop %v1112
      %v1114 = vmul.f32 %v1074, 1.442695
      %v1115 = vpow.pop %v1114
      %v1116 = vmul.f32 %v1075, 1.442695
      %v1117 = vpow.pop %v1116
      %v1118 = vmul.f32 %v1076, 1.442695
      %v1119 = vpow.pop %v1118
      %v1120 = vmul.f32 %v1077, 1.442695
      %v1121 = vpow.pop %v1120
      %v1122 = vmul.f32 %v1078, 1.442695
      %v1123 = vpow.pop %v1122
      %v1124 = vmul.f32 %v1079, 1.442695
      %v1125 = vpow.pop %v1124
      %v1126 = vmul.f32 %v1080, 1.442695
      %v1127 = vpow.pop %v1126
      %v1128 = vmul.f32 %v1081, 1.442695
      %v1129 = vpow.pop %v1128
      %v1130 = vadd.f32 %v1099, 1.0
      %v1131 = vlog2.pop %v1130
      %v1132 = vmul.f32 %v1131, 0.6931472
      %v1133 = vmul.f32 -0.5, %v1099
      %v1134 = vadd.f32 %v1133, 1.0
      %v1135 = vmul.f32 %v1134, %v1099
      %v1136 = vand.u32 2147483647, %v1099
      %vm1137 = vcmp.lt.f32.partialorder %v1136, 0.0004427343
      %v1138 = vsel %vm1137, %v1135, %v1132
      %v1139 = vadd.f32 %v1101, 1.0
      %v1140 = vlog2.pop %v1139
      %v1141 = vmul.f32 %v1140, 0.6931472
      %v1142 = vmul.f32 -0.5, %v1101
      %v1143 = vadd.f32 %v1142, 1.0
      %v1144 = vmul.f32 %v1143, %v1101
      %v1145 = vand.u32 2147483647, %v1101
      %vm1146 = vcmp.lt.f32.partialorder %v1145, 0.0004427343
      %v1147 = vsel %vm1146, %v1144, %v1141
      %v1148 = vadd.f32 %v1103, 1.0
      %v1149 = vlog2.pop %v1148
      %v1150 = vmul.f32 %v1149, 0.6931472
      %v1151 = vmul.f32 -0.5, %v1103
      %v1152 = vadd.f32 %v1151, 1.0
      %v1153 = vmul.f32 %v1152, %v1103
      %v1154 = vand.u32 2147483647, %v1103
      %vm1155 = vcmp.lt.f32.partialorder %v1154, 0.0004427343
      %v1156 = vsel %vm1155, %v1153, %v1150
      %v1157 = vadd.f32 %v1105, 1.0
      %v1158 = vlog2.pop %v1157
      %v1159 = vmul.f32 %v1158, 0.6931472
      %v1160 = vmul.f32 -0.5, %v1105
      %v1161 = vadd.f32 %v1160, 1.0
      %v1162 = vmul.f32 %v1161, %v1105
      %v1163 = vand.u32 2147483647, %v1105
      %vm1164 = vcmp.lt.f32.partialorder %v1163, 0.0004427343
      %v1165 = vsel %vm1164, %v1162, %v1159
      %v1166 = vadd.f32 %v1107, 1.0
      %v1167 = vlog2.pop %v1166
      %v1168 = vmul.f32 %v1167, 0.6931472
      %v1169 = vmul.f32 -0.5, %v1107
      %v1170 = vadd.f32 %v1169, 1.0
      %v1171 = vmul.f32 %v1170, %v1107
      %v1172 = vand.u32 2147483647, %v1107
      %vm1173 = vcmp.lt.f32.partialorder %v1172, 0.0004427343
      %v1174 = vsel %vm1173, %v1171, %v1168
      %v1175 = vadd.f32 %v1109, 1.0
      %v1176 = vlog2.pop %v1175
      %v1177 = vmul.f32 %v1176, 0.6931472
      %v1178 = vmul.f32 -0.5, %v1109
      %v1179 = vadd.f32 %v1178, 1.0
      %v1180 = vmul.f32 %v1179, %v1109
      %v1181 = vand.u32 2147483647, %v1109
      %vm1182 = vcmp.lt.f32.partialorder %v1181, 0.0004427343
      %v1183 = vsel %vm1182, %v1180, %v1177
      %v1184 = vadd.f32 %v1111, 1.0
      %v1185 = vlog2.pop %v1184
      %v1186 = vmul.f32 %v1185, 0.6931472
      %v1187 = vmul.f32 -0.5, %v1111
      %v1188 = vadd.f32 %v1187, 1.0
      %v1189 = vmul.f32 %v1188, %v1111
      %v1190 = vand.u32 2147483647, %v1111
      %vm1191 = vcmp.lt.f32.partialorder %v1190, 0.0004427343
      %v1192 = vsel %vm1191, %v1189, %v1186
      %v1193 = vadd.f32 %v1113, 1.0
      %v1194 = vlog2.pop %v1193
      %v1195 = vmul.f32 %v1194, 0.6931472
      %v1196 = vmul.f32 -0.5, %v1113
      %v1197 = vadd.f32 %v1196, 1.0
      %v1198 = vmul.f32 %v1197, %v1113
      %v1199 = vand.u32 2147483647, %v1113
      %vm1200 = vcmp.lt.f32.partialorder %v1199, 0.0004427343
      %v1201 = vsel %vm1200, %v1198, %v1195
      %v1202 = vadd.f32 %v1115, 1.0
      %v1203 = vlog2.pop %v1202
      %v1204 = vmul.f32 %v1203, 0.6931472
      %v1205 = vmul.f32 -0.5, %v1115
      %v1206 = vadd.f32 %v1205, 1.0
      %v1207 = vmul.f32 %v1206, %v1115
      %v1208 = vand.u32 2147483647, %v1115
      %vm1209 = vcmp.lt.f32.partialorder %v1208, 0.0004427343
      %v1210 = vsel %vm1209, %v1207, %v1204
      %v1211 = vadd.f32 %v1117, 1.0
      %v1212 = vlog2.pop %v1211
      %v1213 = vmul.f32 %v1212, 0.6931472
      %v1214 = vmul.f32 -0.5, %v1117
      %v1215 = vadd.f32 %v1214, 1.0
      %v1216 = vmul.f32 %v1215, %v1117
      %v1217 = vand.u32 2147483647, %v1117
      %vm1218 = vcmp.lt.f32.partialorder %v1217, 0.0004427343
      %v1219 = vsel %vm1218, %v1216, %v1213
      %v1220 = vadd.f32 %v1119, 1.0
      %v1221 = vlog2.pop %v1220
      %v1222 = vmul.f32 %v1221, 0.6931472
      %v1223 = vmul.f32 -0.5, %v1119
      %v1224 = vadd.f32 %v1223, 1.0
      %v1225 = vmul.f32 %v1224, %v1119
      %v1226 = vand.u32 2147483647, %v1119
      %vm1227 = vcmp.lt.f32.partialorder %v1226, 0.0004427343
      %v1228 = vsel %vm1227, %v1225, %v1222
      %v1229 = vadd.f32 %v1121, 1.0
      %v1230 = vlog2.pop %v1229
      %v1231 = vmul.f32 %v1230, 0.6931472
      %v1232 = vmul.f32 -0.5, %v1121
      %v1233 = vadd.f32 %v1232, 1.0
      %v1234 = vmul.f32 %v1233, %v1121
      %v1235 = vand.u32 2147483647, %v1121
      %vm1236 = vcmp.lt.f32.partialorder %v1235, 0.0004427343
      %v1237 = vsel %vm1236, %v1234, %v1231
      %v1238 = vadd.f32 %v1123, 1.0
      %v1239 = vlog2.pop %v1238
      %v1240 = vmul.f32 %v1239, 0.6931472
      %v1241 = vmul.f32 -0.5, %v1123
      %v1242 = vadd.f32 %v1241, 1.0
      %v1243 = vmul.f32 %v1242, %v1123
      %v1244 = vand.u32 2147483647, %v1123
      %vm1245 = vcmp.lt.f32.partialorder %v1244, 0.0004427343
      %v1246 = vsel %vm1245, %v1243, %v1240
      %v1247 = vadd.f32 %v1125, 1.0
      %v1248 = vlog2.pop %v1247
      %v1249 = vmul.f32 %v1248, 0.6931472
      %v1250 = vmul.f32 -0.5, %v1125
      %v1251 = vadd.f32 %v1250, 1.0
      %v1252 = vmul.f32 %v1251, %v1125
      %v1253 = vand.u32 2147483647, %v1125
      %vm1254 = vcmp.lt.f32.partialorder %v1253, 0.0004427343
      %v1255 = vsel %vm1254, %v1252, %v1249
      %v1256 = vadd.f32 %v1127, 1.0
      %v1257 = vlog2.pop %v1256
      %v1258 = vmul.f32 %v1257, 0.6931472
      %v1259 = vmul.f32 -0.5, %v1127
      %v1260 = vadd.f32 %v1259, 1.0
      %v1261 = vmul.f32 %v1260, %v1127
      %v1262 = vand.u32 2147483647, %v1127
      %vm1263 = vcmp.lt.f32.partialorder %v1262, 0.0004427343
      %v1264 = vsel %vm1263, %v1261, %v1258
      %v1265 = vadd.f32 %v1129, 1.0
      %v1266 = vlog2.pop %v1265
      %v1267 = vmul.f32 %v1266, 0.6931472
      %v1268 = vmul.f32 -0.5, %v1129
      %v1269 = vadd.f32 %v1268, 1.0
      %v1270 = vmul.f32 %v1269, %v1129
      %v1271 = vand.u32 2147483647, %v1129
      %vm1272 = vcmp.lt.f32.partialorder %v1271, 0.0004427343
      %v1273 = vsel %vm1272, %v1270, %v1267
      %v1274 = vmul.f32 %v1138, 0.01
      %v1275 = vmul.f32 %v1147, 0.01
      %v1276 = vmul.f32 %v1156, 0.01
      %v1277 = vmul.f32 %v1165, 0.01
      %v1278 = vmul.f32 %v1174, 0.01
      %v1279 = vmul.f32 %v1183, 0.01
      %v1280 = vmul.f32 %v1192, 0.01
      %v1281 = vmul.f32 %v1201, 0.01
      %v1282 = vmul.f32 %v1210, 0.01
      %v1283 = vmul.f32 %v1219, 0.01
      %v1284 = vmul.f32 %v1228, 0.01
      %v1285 = vmul.f32 %v1237, 0.01
      %v1286 = vmul.f32 %v1246, 0.01
      %v1287 = vmul.f32 %v1255, 0.01
      %v1288 = vmul.f32 %v1264, 0.01
      %v1289 = vmul.f32 %v1273, 0.01
      %v1290 = vsel %vm1082, %v972, %v1274
      %v1291 = vsel %vm1083, %v977, %v1275
      %v1292 = vsel %vm1084, %v982, %v1276
      %v1293 = vsel %vm1085, %v987, %v1277
      %v1294 = vsel %vm1086, %v992, %v1278
      %v1295 = vsel %vm1087, %v997, %v1279
      %v1296 = vsel %vm1088, %v1002, %v1280
      %v1297 = vsel %vm1089, %v1007, %v1281
      %v1298 = vsel %vm1090, %v1012, %v1282
      %v1299 = vsel %vm1091, %v1017, %v1283
      %v1300 = vsel %vm1092, %v1022, %v1284
      %v1301 = vsel %vm1093, %v1027, %v1285
      %v1302 = vsel %vm1094, %v1032, %v1286
      %v1303 = vsel %vm1095, %v1037, %v1287
      %v1304 = vsel %vm1096, %v1042, %v1288
      %v1305 = vsel %vm1097, %v1047, %v1289
      %v1306 = vld [vmem:[%s5] sm:$0xff]
      %v1307 = vld [vmem:[%s5 + $0x8] sm:$0xff]
      %v1308 = vld [vmem:[%s5 + $0x10] sm:$0xff]
      %v1309 = vld [vmem:[%s5 + $0x18] sm:$0xff]
      %v1310 = vld [vmem:[%s5 + $0x20] sm:$0xff]
      %v1311 = vld [vmem:[%s5 + $0x28] sm:$0xff]
      %v1312 = vld [vmem:[%s5 + $0x30] sm:$0xff]
      %v1313 = vld [vmem:[%s5 + $0x38] sm:$0x7]
      %v1314 = vld [vmem:[%s6] sm:$0x1f]
      %v1315 = vld [vmem:[%s7] sm:$0x1]
      %v1317 = vsel %vm436, %v1314, 0
      %1319 = vmatprep.subr.mxu0 0.0
      %1320 = vmatpush1.msra.mxu0 %v1317
      %1321 = vmatprep.subr.mxu0 0.0
      %1322 = vmatpush1.msra.mxu0 0.0
      %1323 = vmatprep.subr.mxu0 0.0
      %1324 = vmatpush1.msra.mxu0 0.0
      %1325 = vmatprep.subr.mxu0 0.0
      %1326 = vmatpush1.msra.mxu0 0.0
      %1327 = vmatprep.subr.mxu0 0.0
      %1328 = vmatpush1.msra.mxu0 0.0
      %1329 = vmatprep.subr.mxu0 0.0
      %1330 = vmatpush1.msra.mxu0 0.0
      %1331 = vmatprep.subr.mxu0 0.0
      %1332 = vmatpush1.msra.mxu0 0.0
      %1333 = vmatprep.subr.mxu0 0.0
      %1334 = vmatpush1.msra.mxu0 0.0
      %1335 = vmatprep.subr.mxu0 0.0
      %1336 = vmatpush1.msra.mxu0 0.0
      %1337 = vmatprep.subr.mxu0 0.0
      %1338 = vmatpush1.msra.mxu0 0.0
      %1339 = vmatprep.subr.mxu0 0.0
      %1340 = vmatpush1.msra.mxu0 0.0
      %1341 = vmatprep.subr.mxu0 0.0
      %1342 = vmatpush1.msra.mxu0 0.0
      %1343 = vmatprep.subr.mxu0 0.0
      %1344 = vmatpush1.msra.mxu0 0.0
      %1345 = vmatprep.subr.mxu0 0.0
      %1346 = vmatpush1.msra.mxu0 0.0
      %1347 = vmatprep.subr.mxu0 0.0
      %1348 = vmatpush1.msra.mxu0 0.0
      %1349 = vmatprep.subr.mxu0 0.0
      %1350 = vmatpush1.msra.mxu0 0.0
      %1351 = vmatprep.subr.mxu0 0.0
      %1352 = vmatpush1.msra.mxu0 0.0
      %1353 = vmatprep.subr.mxu0 0.0
      %1354 = vmatpush1.msra.mxu0 0.0
      %1355 = vmatprep.subr.mxu0 0.0
      %1356 = vmatpush1.msra.mxu0 0.0
      %1357 = vmatprep.subr.mxu0 0.0
      %1358 = vmatpush1.msra.mxu0 0.0
      %1359 = vmatprep.subr.mxu0 0.0
      %1360 = vmatpush1.msra.mxu0 0.0
      %1361 = vmatprep.subr.mxu0 0.0
      %1362 = vmatpush1.msra.mxu0 0.0
      %1363 = vmatprep.subr.mxu0 0.0
      %1364 = vmatpush1.msra.mxu0 0.0
      %1365 = vmatprep.subr.mxu0 0.0
      %1366 = vmatpush1.msra.mxu0 0.0
      %1367 = vmatprep.subr.mxu0 0.0
      %1368 = vmatpush1.msra.mxu0 0.0
      %1369 = vmatprep.subr.mxu0 0.0
      %1370 = vmatpush1.msra.mxu0 0.0
      %1371 = vmatprep.subr.mxu0 0.0
      %1372 = vmatpush1.msra.mxu0 0.0
      %1373 = vmatprep.subr.mxu0 0.0
      %1374 = vmatpush1.msra.mxu0 0.0
      %1375 = vmatprep.subr.mxu0 0.0
      %1376 = vmatpush1.msra.mxu0 0.0
      %1377 = vmatprep.subr.mxu0 0.0
      %1378 = vmatpush1.msra.mxu0 0.0
      %1379 = vmatprep.subr.mxu0 0.0
      %1380 = vmatpush1.msra.mxu0 0.0
      %1381 = vmatprep.subr.mxu0 0.0
      %1382 = vmatpush1.msra.mxu0 0.0
      %1383 = vmatprep.mubr.f32.mxu0 0.0
      %1384 = vmatmul.mubr.f32.gmra.mrb[0].mxu0 %v389
      %v1385 = vpop.f32.mrb[0].mxu0
      %v1386 = vadd.f32 0.0, %v1385
      %v1387 = vpop.f32.mrb[0].mxu0
      %1388 = vmatprep.mubr.f32.mxu0 0.0
      %1389 = vmatmul.mubr.f32.gmra.mrb[0].mxu0 %v392
      %v1390 = vpop.f32.mrb[0].mxu0
      %v1391 = vadd.f32 0.0, %v1390
      %v1392 = vpop.f32.mrb[0].mxu0
      %1393 = vmatprep.mubr.f32.mxu0 0.0
      %1394 = vmatmul.mubr.f32.gmra.mrb[0].mxu0 %v395
      %v1395 = vpop.f32.mrb[0].mxu0
      %v1396 = vadd.f32 0.0, %v1395
      %v1397 = vpop.f32.mrb[0].mxu0
      %1398 = vmatprep.mubr.f32.mxu0 0.0
      %1399 = vmatmul.mubr.f32.gmra.mrb[0].mxu0 %v398
      %v1400 = vpop.f32.mrb[0].mxu0
      %v1401 = vadd.f32 0.0, %v1400
      %v1402 = vpop.f32.mrb[0].mxu0
      %1403 = vmatprep.mubr.f32.mxu0 0.0
      %1404 = vmatmul.mubr.f32.gmra.mrb[0].mxu0 %v401
      %v1405 = vpop.f32.mrb[0].mxu0
      %v1406 = vadd.f32 0.0, %v1405
      %v1407 = vpop.f32.mrb[0].mxu0
      %1408 = vmatprep.mubr.f32.mxu0 0.0
      %1409 = vmatmul.mubr.f32.gmra.mrb[0].mxu0 %v404
      %v1410 = vpop.f32.mrb[0].mxu0
      %v1411 = vadd.f32 0.0, %v1410
      %v1412 = vpop.f32.mrb[0].mxu0
      %1413 = vmatprep.mubr.f32.mxu0 0.0
      %1414 = vmatmul.mubr.f32.gmra.mrb[0].mxu0 %v407
      %v1415 = vpop.f32.mrb[0].mxu0
      %v1416 = vadd.f32 0.0, %v1415
      %v1417 = vpop.f32.mrb[0].mxu0
      %1418 = vmatprep.mubr.f32.mxu0 0.0
      %1419 = vmatmul.mubr.f32.gmra.mrb[0].mxu0 %v410
      %v1420 = vpop.f32.mrb[0].mxu0
      %v1421 = vadd.f32 0.0, %v1420
      %v1422 = vpop.f32.mrb[0].mxu0
      %1423 = vmatprep.mubr.f32.mxu0 0.0
      %1424 = vmatmul.mubr.f32.gmra.mrb[0].mxu0 %v413
      %v1425 = vpop.f32.mrb[0].mxu0
      %v1426 = vadd.f32 0.0, %v1425
      %v1427 = vpop.f32.mrb[0].mxu0
      %1428 = vmatprep.mubr.f32.mxu0 0.0
      %1429 = vmatmul.mubr.f32.gmra.mrb[0].mxu0 %v416
      %v1430 = vpop.f32.mrb[0].mxu0
      %v1431 = vadd.f32 0.0, %v1430
      %v1432 = vpop.f32.mrb[0].mxu0
      %1433 = vmatprep.mubr.f32.mxu0 0.0
      %1434 = vmatmul.mubr.f32.gmra.mrb[0].mxu0 %v419
      %v1435 = vpop.f32.mrb[0].mxu0
      %v1436 = vadd.f32 0.0, %v1435
      %v1437 = vpop.f32.mrb[0].mxu0
      %1438 = vmatprep.mubr.f32.mxu0 0.0
      %1439 = vmatmul.mubr.f32.gmra.mrb[0].mxu0 %v422
      %v1440 = vpop.f32.mrb[0].mxu0
      %v1441 = vadd.f32 0.0, %v1440
      %v1442 = vpop.f32.mrb[0].mxu0
      %1443 = vmatprep.mubr.f32.mxu0 0.0
      %1444 = vmatmul.mubr.f32.gmra.mrb[0].mxu0 %v425
      %v1445 = vpop.f32.mrb[0].mxu0
      %v1446 = vadd.f32 0.0, %v1445
      %v1447 = vpop.f32.mrb[0].mxu0
      %1448 = vmatprep.mubr.f32.mxu0 0.0
      %1449 = vmatmul.mubr.f32.gmra.mrb[0].mxu0 %v428
      %v1450 = vpop.f32.mrb[0].mxu0
      %v1451 = vadd.f32 0.0, %v1450
      %v1452 = vpop.f32.mrb[0].mxu0
      %1453 = vmatprep.mubr.f32.mxu0 0.0
      %1454 = vmatmul.mubr.f32.gmra.mrb[0].mxu0 %v431
      %v1455 = vpop.f32.mrb[0].mxu0
      %v1456 = vadd.f32 0.0, %v1455
      %v1457 = vpop.f32.mrb[0].mxu0
      %1458 = vmatprep.mubr.f32.mxu0 0.0
      %1459 = vmatmul.mubr.f32.gmra.mrb[0].mxu0 %v434
      %v1460 = vpop.f32.mrb[0].mxu0
      %v1461 = vadd.f32 0.0, %v1460
      %v1462 = vpop.f32.mrb[0].mxu0
      %1463 = vdwg.mxu0
      %vm1464 = vcmask 482304
      %v1466 = vsel %vm1464, %v1290, 0
      %v1469 = vsel %vm1464, %v1291, 0
      %v1472 = vsel %vm1464, %v1292, 0
      %v1475 = vsel %vm1464, %v1293, 0
      %v1478 = vsel %vm1464, %v1294, 0
      %v1481 = vsel %vm1464, %v1295, 0
      %v1484 = vsel %vm1464, %v1296, 0
      %v1487 = vsel %vm1464, %v1297, 0
      %v1490 = vsel %vm1464, %v1298, 0
      %v1493 = vsel %vm1464, %v1299, 0
      %v1496 = vsel %vm1464, %v1300, 0
      %v1499 = vsel %vm1464, %v1301, 0
      %v1502 = vsel %vm1464, %v1302, 0
      %v1505 = vsel %vm1464, %v1303, 0
      %v1508 = vsel %vm1464, %v1304, 0
      %v1511 = vsel %vm1464, %v1305, 0
      %vm1513 = vcmask 1042432
      %v1515 = vsel %vm1513, %v1313, 0
      %1517 = vmatprep.subr.mxu0 0.0
      %1518 = vmatpush1.msra.mxu0 %v1306
      %1519 = vmatprep.subr.mxu0 0.0
      %1520 = vmatpush1.msra.mxu0 %v1307
      %1521 = vmatprep.subr.mxu0 0.0
      %1522 = vmatpush1.msra.mxu0 %v1308
      %1523 = vmatprep.subr.mxu0 0.0
      %1524 = vmatpush1.msra.mxu0 %v1309
      %1525 = vmatprep.subr.mxu0 0.0
      %1526 = vmatpush1.msra.mxu0 %v1310
      %1527 = vmatprep.subr.mxu0 0.0
      %1528 = vmatpush1.msra.mxu0 %v1311
      %1529 = vmatprep.subr.mxu0 0.0
      %1530 = vmatpush1.msra.mxu0 %v1312
      %1531 = vmatprep.subr.mxu0 0.0
      %1532 = vmatpush1.msra.mxu0 %v1515
      %1533 = vmatprep.subr.mxu0 0.0
      %1534 = vmatpush1.msra.mxu0 0.0
      %1535 = vmatprep.subr.mxu0 0.0
      %1536 = vmatpush1.msra.mxu0 0.0
      %1537 = vmatprep.subr.mxu0 0.0
      %1538 = vmatpush1.msra.mxu0 0.0
      %1539 = vmatprep.subr.mxu0 0.0
      %1540 = vmatpush1.msra.mxu0 0.0
      %1541 = vmatprep.subr.mxu0 0.0
      %1542 = vmatpush1.msra.mxu0 0.0
      %1543 = vmatprep.subr.mxu0 0.0
      %1544 = vmatpush1.msra.mxu0 0.0
      %1545 = vmatprep.subr.mxu0 0.0
      %1546 = vmatpush1.msra.mxu0 0.0
      %1547 = vmatprep.subr.mxu0 0.0
      %1548 = vmatpush1.msra.mxu0 0.0
      %1549 = vmatprep.subr.mxu0 0.0
      %1550 = vmatpush1.msra.mxu0 0.0
      %1551 = vmatprep.subr.mxu0 0.0
      %1552 = vmatpush1.msra.mxu0 0.0
      %1553 = vmatprep.subr.mxu0 0.0
      %1554 = vmatpush1.msra.mxu0 0.0
      %1555 = vmatprep.subr.mxu0 0.0
      %1556 = vmatpush1.msra.mxu0 0.0
      %1557 = vmatprep.subr.mxu0 0.0
      %1558 = vmatpush1.msra.mxu0 0.0
      %1559 = vmatprep.subr.mxu0 0.0
      %1560 = vmatpush1.msra.mxu0 0.0
      %1561 = vmatprep.subr.mxu0 0.0
      %1562 = vmatpush1.msra.mxu0 0.0
      %1563 = vmatprep.subr.mxu0 0.0
      %1564 = vmatpush1.msra.mxu0 0.0
      %1565 = vmatprep.subr.mxu0 0.0
      %1566 = vmatpush1.msra.mxu0 0.0
      %1567 = vmatprep.subr.mxu0 0.0
      %1568 = vmatpush1.msra.mxu0 0.0
      %1569 = vmatprep.subr.mxu0 0.0
      %1570 = vmatpush1.msra.mxu0 0.0
      %1571 = vmatprep.subr.mxu0 0.0
      %1572 = vmatpush1.msra.mxu0 0.0
      %1573 = vmatprep.subr.mxu0 0.0
      %1574 = vmatpush1.msra.mxu0 0.0
      %1575 = vmatprep.subr.mxu0 0.0
      %1576 = vmatpush1.msra.mxu0 0.0
      %1577 = vmatprep.subr.mxu0 0.0
      %1578 = vmatpush1.msra.mxu0 0.0
      %1579 = vmatprep.subr.mxu0 0.0
      %1580 = vmatpush1.msra.mxu0 0.0
      %1581 = vmatprep.mubr.f32.mxu0 0.0
      %1582 = vmatmul.mubr.f32.gmra.mrb[0].mxu0 %v1466
      %v1583 = vpop.f32.mrb[0].mxu0
      %v1584 = vadd.f32 %v1386, %v1583
      %v1585 = vpop.f32.mrb[0].mxu0
      %1586 = vmatprep.mubr.f32.mxu0 0.0
      %1587 = vmatmul.mubr.f32.gmra.mrb[0].mxu0 %v1469
      %v1588 = vpop.f32.mrb[0].mxu0
      %v1589 = vadd.f32 %v1391, %v1588
      %v1590 = vpop.f32.mrb[0].mxu0
      %1591 = vmatprep.mubr.f32.mxu0 0.0
      %1592 = vmatmul.mubr.f32.gmra.mrb[0].mxu0 %v1472
      %v1593 = vpop.f32.mrb[0].mxu0
      %v1594 = vadd.f32 %v1396, %v1593
      %v1595 = vpop.f32.mrb[0].mxu0
      %1596 = vmatprep.mubr.f32.mxu0 0.0
      %1597 = vmatmul.mubr.f32.gmra.mrb[0].mxu0 %v1475
      %v1598 = vpop.f32.mrb[0].mxu0
      %v1599 = vadd.f32 %v1401, %v1598
      %v1600 = vpop.f32.mrb[0].mxu0
      %1601 = vmatprep.mubr.f32.mxu0 0.0
      %1602 = vmatmul.mubr.f32.gmra.mrb[0].mxu0 %v1478
      %v1603 = vpop.f32.mrb[0].mxu0
      %v1604 = vadd.f32 %v1406, %v1603
      %v1605 = vpop.f32.mrb[0].mxu0
      %1606 = vmatprep.mubr.f32.mxu0 0.0
      %1607 = vmatmul.mubr.f32.gmra.mrb[0].mxu0 %v1481
      %v1608 = vpop.f32.mrb[0].mxu0
      %v1609 = vadd.f32 %v1411, %v1608
      %v1610 = vpop.f32.mrb[0].mxu0
      %1611 = vmatprep.mubr.f32.mxu0 0.0
      %1612 = vmatmul.mubr.f32.gmra.mrb[0].mxu0 %v1484
      %v1613 = vpop.f32.mrb[0].mxu0
      %v1614 = vadd.f32 %v1416, %v1613
      %v1615 = vpop.f32.mrb[0].mxu0
      %1616 = vmatprep.mubr.f32.mxu0 0.0
      %1617 = vmatmul.mubr.f32.gmra.mrb[0].mxu0 %v1487
      %v1618 = vpop.f32.mrb[0].mxu0
      %v1619 = vadd.f32 %v1421, %v1618
      %v1620 = vpop.f32.mrb[0].mxu0
      %1621 = vmatprep.mubr.f32.mxu0 0.0
      %1622 = vmatmul.mubr.f32.gmra.mrb[0].mxu0 %v1490
      %v1623 = vpop.f32.mrb[0].mxu0
      %v1624 = vadd.f32 %v1426, %v1623
      %v1625 = vpop.f32.mrb[0].mxu0
      %1626 = vmatprep.mubr.f32.mxu0 0.0
      %1627 = vmatmul.mubr.f32.gmra.mrb[0].mxu0 %v1493
      %v1628 = vpop.f32.mrb[0].mxu0
      %v1629 = vadd.f32 %v1431, %v1628
      %v1630 = vpop.f32.mrb[0].mxu0
      %1631 = vmatprep.mubr.f32.mxu0 0.0
      %1632 = vmatmul.mubr.f32.gmra.mrb[0].mxu0 %v1496
      %v1633 = vpop.f32.mrb[0].mxu0
      %v1634 = vadd.f32 %v1436, %v1633
      %v1635 = vpop.f32.mrb[0].mxu0
      %1636 = vmatprep.mubr.f32.mxu0 0.0
      %1637 = vmatmul.mubr.f32.gmra.mrb[0].mxu0 %v1499
      %v1638 = vpop.f32.mrb[0].mxu0
      %v1639 = vadd.f32 %v1441, %v1638
      %v1640 = vpop.f32.mrb[0].mxu0
      %1641 = vmatprep.mubr.f32.mxu0 0.0
      %1642 = vmatmul.mubr.f32.gmra.mrb[0].mxu0 %v1502
      %v1643 = vpop.f32.mrb[0].mxu0
      %v1644 = vadd.f32 %v1446, %v1643
      %v1645 = vpop.f32.mrb[0].mxu0
      %1646 = vmatprep.mubr.f32.mxu0 0.0
      %1647 = vmatmul.mubr.f32.gmra.mrb[0].mxu0 %v1505
      %v1648 = vpop.f32.mrb[0].mxu0
      %v1649 = vadd.f32 %v1451, %v1648
      %v1650 = vpop.f32.mrb[0].mxu0
      %1651 = vmatprep.mubr.f32.mxu0 0.0
      %1652 = vmatmul.mubr.f32.gmra.mrb[0].mxu0 %v1508
      %v1653 = vpop.f32.mrb[0].mxu0
      %v1654 = vadd.f32 %v1456, %v1653
      %v1655 = vpop.f32.mrb[0].mxu0
      %1656 = vmatprep.mubr.f32.mxu0 0.0
      %1657 = vmatmul.mubr.f32.gmra.mrb[0].mxu0 %v1511
      %v1658 = vpop.f32.mrb[0].mxu0
      %v1659 = vadd.f32 %v1461, %v1658
      %v1660 = vpop.f32.mrb[0].mxu0
      %1661 = vdwg.mxu0
      %v1663 = vlaneseq
      %v1664 = vshrl.u32 %v1663, 7
      %v1665 = vsub.s32 0, %v1664
      %v1666 = vrot.slane %v1315, %v1665
      %v1668 = vadd.f32 %v1584, %v1666
      %v1669 = vadd.f32 %v1589, %v1666
      %v1670 = vadd.f32 %v1594, %v1666
      %v1671 = vadd.f32 %v1599, %v1666
      %v1672 = vadd.f32 %v1604, %v1666
      %v1673 = vadd.f32 %v1609, %v1666
      %v1674 = vadd.f32 %v1614, %v1666
      %v1675 = vadd.f32 %v1619, %v1666
      %v1676 = vadd.f32 %v1624, %v1666
      %v1677 = vadd.f32 %v1629, %v1666
      %v1678 = vadd.f32 %v1634, %v1666
      %v1679 = vadd.f32 %v1639, %v1666
      %v1680 = vadd.f32 %v1644, %v1666
      %v1681 = vadd.f32 %v1649, %v1666
      %v1682 = vadd.f32 %v1654, %v1666
      %v1683 = vadd.f32 %v1659, %v1666
      %v1684 = vmul.f32 %v1668, 100.0
      %v1685 = vmul.f32 %v1669, 100.0
      %v1686 = vmul.f32 %v1670, 100.0
      %v1687 = vmul.f32 %v1671, 100.0
      %v1688 = vmul.f32 %v1672, 100.0
      %v1689 = vmul.f32 %v1673, 100.0
      %v1690 = vmul.f32 %v1674, 100.0
      %v1691 = vmul.f32 %v1675, 100.0
      %v1692 = vmul.f32 %v1676, 100.0
      %v1693 = vmul.f32 %v1677, 100.0
      %v1694 = vmul.f32 %v1678, 100.0
      %v1695 = vmul.f32 %v1679, 100.0
      %v1696 = vmul.f32 %v1680, 100.0
      %v1697 = vmul.f32 %v1681, 100.0
      %v1698 = vmul.f32 %v1682, 100.0
      %v1699 = vmul.f32 %v1683, 100.0
      %v1700 = vmin.f32 %v1684, 30.0
      %v1701 = vmin.f32 %v1685, 30.0
      %v1702 = vmin.f32 %v1686, 30.0
      %v1703 = vmin.f32 %v1687, 30.0
      %v1704 = vmin.f32 %v1688, 30.0
      %v1705 = vmin.f32 %v1689, 30.0
      %v1706 = vmin.f32 %v1690, 30.0
      %v1707 = vmin.f32 %v1691, 30.0
      %v1708 = vmin.f32 %v1692, 30.0
      %v1709 = vmin.f32 %v1693, 30.0
      %v1710 = vmin.f32 %v1694, 30.0
      %v1711 = vmin.f32 %v1695, 30.0
      %v1712 = vmin.f32 %v1696, 30.0
      %v1713 = vmin.f32 %v1697, 30.0
      %v1714 = vmin.f32 %v1698, 30.0
      %v1715 = vmin.f32 %v1699, 30.0
      %vm1716 = vcmp.gt.f32.partialorder %v1684, 20.0
      %vm1717 = vcmp.gt.f32.partialorder %v1685, 20.0
      %vm1718 = vcmp.gt.f32.partialorder %v1686, 20.0
      %vm1719 = vcmp.gt.f32.partialorder %v1687, 20.0
      %vm1720 = vcmp.gt.f32.partialorder %v1688, 20.0
      %vm1721 = vcmp.gt.f32.partialorder %v1689, 20.0
      %vm1722 = vcmp.gt.f32.partialorder %v1690, 20.0
      %vm1723 = vcmp.gt.f32.partialorder %v1691, 20.0
      %vm1724 = vcmp.gt.f32.partialorder %v1692, 20.0
      %vm1725 = vcmp.gt.f32.partialorder %v1693, 20.0
      %vm1726 = vcmp.gt.f32.partialorder %v1694, 20.0
      %vm1727 = vcmp.gt.f32.partialorder %v1695, 20.0
      %vm1728 = vcmp.gt.f32.partialorder %v1696, 20.0
      %vm1729 = vcmp.gt.f32.partialorder %v1697, 20.0
      %vm1730 = vcmp.gt.f32.partialorder %v1698, 20.0
      %vm1731 = vcmp.gt.f32.partialorder %v1699, 20.0
      %v1732 = vmul.f32 %v1700, 1.442695
      %v1733 = vpow.pop %v1732
      %v1734 = vmul.f32 %v1701, 1.442695
      %v1735 = vpow.pop %v1734
      %v1736 = vmul.f32 %v1702, 1.442695
      %v1737 = vpow.pop %v1736
      %v1738 = vmul.f32 %v1703, 1.442695
      %v1739 = vpow.pop %v1738
      %v1740 = vmul.f32 %v1704, 1.442695
      %v1741 = vpow.pop %v1740
      %v1742 = vmul.f32 %v1705, 1.442695
      %v1743 = vpow.pop %v1742
      %v1744 = vmul.f32 %v1706, 1.442695
      %v1745 = vpow.pop %v1744
      %v1746 = vmul.f32 %v1707, 1.442695
      %v1747 = vpow.pop %v1746
      %v1748 = vmul.f32 %v1708, 1.442695
      %v1749 = vpow.pop %v1748
      %v1750 = vmul.f32 %v1709, 1.442695
      %v1751 = vpow.pop %v1750
      %v1752 = vmul.f32 %v1710, 1.442695
      %v1753 = vpow.pop %v1752
      %v1754 = vmul.f32 %v1711, 1.442695
      %v1755 = vpow.pop %v1754
      %v1756 = vmul.f32 %v1712, 1.442695
      %v1757 = vpow.pop %v1756
      %v1758 = vmul.f32 %v1713, 1.442695
      %v1759 = vpow.pop %v1758
      %v1760 = vmul.f32 %v1714, 1.442695
      %v1761 = vpow.pop %v1760
      %v1762 = vmul.f32 %v1715, 1.442695
      %v1763 = vpow.pop %v1762
      %v1764 = vadd.f32 %v1733, 1.0
      %v1765 = vlog2.pop %v1764
      %v1766 = vmul.f32 %v1765, 0.6931472
      %v1767 = vmul.f32 -0.5, %v1733
      %v1768 = vadd.f32 %v1767, 1.0
      %v1769 = vmul.f32 %v1768, %v1733
      %v1770 = vand.u32 2147483647, %v1733
      %vm1771 = vcmp.lt.f32.partialorder %v1770, 0.0004427343
      %v1772 = vsel %vm1771, %v1769, %v1766
      %v1773 = vadd.f32 %v1735, 1.0
      %v1774 = vlog2.pop %v1773
      %v1775 = vmul.f32 %v1774, 0.6931472
      %v1776 = vmul.f32 -0.5, %v1735
      %v1777 = vadd.f32 %v1776, 1.0
      %v1778 = vmul.f32 %v1777, %v1735
      %v1779 = vand.u32 2147483647, %v1735
      %vm1780 = vcmp.lt.f32.partialorder %v1779, 0.0004427343
      %v1781 = vsel %vm1780, %v1778, %v1775
      %v1782 = vadd.f32 %v1737, 1.0
      %v1783 = vlog2.pop %v1782
      %v1784 = vmul.f32 %v1783, 0.6931472
      %v1785 = vmul.f32 -0.5, %v1737
      %v1786 = vadd.f32 %v1785, 1.0
      %v1787 = vmul.f32 %v1786, %v1737
      %v1788 = vand.u32 2147483647, %v1737
      %vm1789 = vcmp.lt.f32.partialorder %v1788, 0.0004427343
      %v1790 = vsel %vm1789, %v1787, %v1784
      %v1791 = vadd.f32 %v1739, 1.0
      %v1792 = vlog2.pop %v1791
      %v1793 = vmul.f32 %v1792, 0.6931472
      %v1794 = vmul.f32 -0.5, %v1739
      %v1795 = vadd.f32 %v1794, 1.0
      %v1796 = vmul.f32 %v1795, %v1739
      %v1797 = vand.u32 2147483647, %v1739
      %vm1798 = vcmp.lt.f32.partialorder %v1797, 0.0004427343
      %v1799 = vsel %vm1798, %v1796, %v1793
      %v1800 = vadd.f32 %v1741, 1.0
      %v1801 = vlog2.pop %v1800
      %v1802 = vmul.f32 %v1801, 0.6931472
      %v1803 = vmul.f32 -0.5, %v1741
      %v1804 = vadd.f32 %v1803, 1.0
      %v1805 = vmul.f32 %v1804, %v1741
      %v1806 = vand.u32 2147483647, %v1741
      %vm1807 = vcmp.lt.f32.partialorder %v1806, 0.0004427343
      %v1808 = vsel %vm1807, %v1805, %v1802
      %v1809 = vadd.f32 %v1743, 1.0
      %v1810 = vlog2.pop %v1809
      %v1811 = vmul.f32 %v1810, 0.6931472
      %v1812 = vmul.f32 -0.5, %v1743
      %v1813 = vadd.f32 %v1812, 1.0
      %v1814 = vmul.f32 %v1813, %v1743
      %v1815 = vand.u32 2147483647, %v1743
      %vm1816 = vcmp.lt.f32.partialorder %v1815, 0.0004427343
      %v1817 = vsel %vm1816, %v1814, %v1811
      %v1818 = vadd.f32 %v1745, 1.0
      %v1819 = vlog2.pop %v1818
      %v1820 = vmul.f32 %v1819, 0.6931472
      %v1821 = vmul.f32 -0.5, %v1745
      %v1822 = vadd.f32 %v1821, 1.0
      %v1823 = vmul.f32 %v1822, %v1745
      %v1824 = vand.u32 2147483647, %v1745
      %vm1825 = vcmp.lt.f32.partialorder %v1824, 0.0004427343
      %v1826 = vsel %vm1825, %v1823, %v1820
      %v1827 = vadd.f32 %v1747, 1.0
      %v1828 = vlog2.pop %v1827
      %v1829 = vmul.f32 %v1828, 0.6931472
      %v1830 = vmul.f32 -0.5, %v1747
      %v1831 = vadd.f32 %v1830, 1.0
      %v1832 = vmul.f32 %v1831, %v1747
      %v1833 = vand.u32 2147483647, %v1747
      %vm1834 = vcmp.lt.f32.partialorder %v1833, 0.0004427343
      %v1835 = vsel %vm1834, %v1832, %v1829
      %v1836 = vadd.f32 %v1749, 1.0
      %v1837 = vlog2.pop %v1836
      %v1838 = vmul.f32 %v1837, 0.6931472
      %v1839 = vmul.f32 -0.5, %v1749
      %v1840 = vadd.f32 %v1839, 1.0
      %v1841 = vmul.f32 %v1840, %v1749
      %v1842 = vand.u32 2147483647, %v1749
      %vm1843 = vcmp.lt.f32.partialorder %v1842, 0.0004427343
      %v1844 = vsel %vm1843, %v1841, %v1838
      %v1845 = vadd.f32 %v1751, 1.0
      %v1846 = vlog2.pop %v1845
      %v1847 = vmul.f32 %v1846, 0.6931472
      %v1848 = vmul.f32 -0.5, %v1751
      %v1849 = vadd.f32 %v1848, 1.0
      %v1850 = vmul.f32 %v1849, %v1751
      %v1851 = vand.u32 2147483647, %v1751
      %vm1852 = vcmp.lt.f32.partialorder %v1851, 0.0004427343
      %v1853 = vsel %vm1852, %v1850, %v1847
      %v1854 = vadd.f32 %v1753, 1.0
      %v1855 = vlog2.pop %v1854
      %v1856 = vmul.f32 %v1855, 0.6931472
      %v1857 = vmul.f32 -0.5, %v1753
      %v1858 = vadd.f32 %v1857, 1.0
      %v1859 = vmul.f32 %v1858, %v1753
      %v1860 = vand.u32 2147483647, %v1753
      %vm1861 = vcmp.lt.f32.partialorder %v1860, 0.0004427343
      %v1862 = vsel %vm1861, %v1859, %v1856
      %v1863 = vadd.f32 %v1755, 1.0
      %v1864 = vlog2.pop %v1863
      %v1865 = vmul.f32 %v1864, 0.6931472
      %v1866 = vmul.f32 -0.5, %v1755
      %v1867 = vadd.f32 %v1866, 1.0
      %v1868 = vmul.f32 %v1867, %v1755
      %v1869 = vand.u32 2147483647, %v1755
      %vm1870 = vcmp.lt.f32.partialorder %v1869, 0.0004427343
      %v1871 = vsel %vm1870, %v1868, %v1865
      %v1872 = vadd.f32 %v1757, 1.0
      %v1873 = vlog2.pop %v1872
      %v1874 = vmul.f32 %v1873, 0.6931472
      %v1875 = vmul.f32 -0.5, %v1757
      %v1876 = vadd.f32 %v1875, 1.0
      %v1877 = vmul.f32 %v1876, %v1757
      %v1878 = vand.u32 2147483647, %v1757
      %vm1879 = vcmp.lt.f32.partialorder %v1878, 0.0004427343
      %v1880 = vsel %vm1879, %v1877, %v1874
      %v1881 = vadd.f32 %v1759, 1.0
      %v1882 = vlog2.pop %v1881
      %v1883 = vmul.f32 %v1882, 0.6931472
      %v1884 = vmul.f32 -0.5, %v1759
      %v1885 = vadd.f32 %v1884, 1.0
      %v1886 = vmul.f32 %v1885, %v1759
      %v1887 = vand.u32 2147483647, %v1759
      %vm1888 = vcmp.lt.f32.partialorder %v1887, 0.0004427343
      %v1889 = vsel %vm1888, %v1886, %v1883
      %v1890 = vadd.f32 %v1761, 1.0
      %v1891 = vlog2.pop %v1890
      %v1892 = vmul.f32 %v1891, 0.6931472
      %v1893 = vmul.f32 -0.5, %v1761
      %v1894 = vadd.f32 %v1893, 1.0
      %v1895 = vmul.f32 %v1894, %v1761
      %v1896 = vand.u32 2147483647, %v1761
      %vm1897 = vcmp.lt.f32.partialorder %v1896, 0.0004427343
      %v1898 = vsel %vm1897, %v1895, %v1892
      %v1899 = vadd.f32 %v1763, 1.0
      %v1900 = vlog2.pop %v1899
      %v1901 = vmul.f32 %v1900, 0.6931472
      %v1902 = vmul.f32 -0.5, %v1763
      %v1903 = vadd.f32 %v1902, 1.0
      %v1904 = vmul.f32 %v1903, %v1763
      %v1905 = vand.u32 2147483647, %v1763
      %vm1906 = vcmp.lt.f32.partialorder %v1905, 0.0004427343
      %v1907 = vsel %vm1906, %v1904, %v1901
      %v1908 = vmul.f32 %v1772, 0.01
      %v1909 = vmul.f32 %v1781, 0.01
      %v1910 = vmul.f32 %v1790, 0.01
      %v1911 = vmul.f32 %v1799, 0.01
      %v1912 = vmul.f32 %v1808, 0.01
      %v1913 = vmul.f32 %v1817, 0.01
      %v1914 = vmul.f32 %v1826, 0.01
      %v1915 = vmul.f32 %v1835, 0.01
      %v1916 = vmul.f32 %v1844, 0.01
      %v1917 = vmul.f32 %v1853, 0.01
      %v1918 = vmul.f32 %v1862, 0.01
      %v1919 = vmul.f32 %v1871, 0.01
      %v1920 = vmul.f32 %v1880, 0.01
      %v1921 = vmul.f32 %v1889, 0.01
      %v1922 = vmul.f32 %v1898, 0.01
      %v1923 = vmul.f32 %v1907, 0.01
      %v1924 = vsel %vm1716, %v1668, %v1908
      %v1925 = vsel %vm1717, %v1669, %v1909
      %v1926 = vsel %vm1718, %v1670, %v1910
      %v1927 = vsel %vm1719, %v1671, %v1911
      %v1928 = vsel %vm1720, %v1672, %v1912
      %v1929 = vsel %vm1721, %v1673, %v1913
      %v1930 = vsel %vm1722, %v1674, %v1914
      %v1931 = vsel %vm1723, %v1675, %v1915
      %v1932 = vsel %vm1724, %v1676, %v1916
      %v1933 = vsel %vm1725, %v1677, %v1917
      %v1934 = vsel %vm1726, %v1678, %v1918
      %v1935 = vsel %vm1727, %v1679, %v1919
      %v1936 = vsel %vm1728, %v1680, %v1920
      %v1937 = vsel %vm1729, %v1681, %v1921
      %v1938 = vsel %vm1730, %v1682, %v1922
      %v1939 = vsel %vm1731, %v1683, %v1923
      %v1940 = vld [vmem:[%s8] sm:$0xff]
      %v1941 = vld [vmem:[%s8 + $0x8] sm:$0xff]
      %v1942 = vld [vmem:[%s8 + $0x10] sm:$0xff]
      %v1943 = vld [vmem:[%s8 + $0x18] sm:$0xff]
      %v1944 = vld [vmem:[%s8 + $0x20] sm:$0xff]
      %v1945 = vld [vmem:[%s8 + $0x28] sm:$0xff]
      %v1946 = vld [vmem:[%s8 + $0x30] sm:$0xff]
      %v1947 = vld [vmem:[%s8 + $0x38] sm:$0xff]
      %v1948 = vld [vmem:[%s9] sm:$0x1]
      %v1950 = vlaneseq
      %v1951 = vshrl.u32 %v1950, 7
      %v1952 = vsub.s32 0, %v1951
      %v1953 = vrot.slane %v1948, %v1952
      %v1956 = vsel %vm856, %v1924, 0
      %v1959 = vsel %vm856, %v1925, 0
      %v1962 = vsel %vm856, %v1926, 0
      %v1965 = vsel %vm856, %v1927, 0
      %v1968 = vsel %vm856, %v1928, 0
      %v1971 = vsel %vm856, %v1929, 0
      %v1974 = vsel %vm856, %v1930, 0
      %v1977 = vsel %vm856, %v1931, 0
      %v1980 = vsel %vm856, %v1932, 0
      %v1983 = vsel %vm856, %v1933, 0
      %v1986 = vsel %vm856, %v1934, 0
      %v1989 = vsel %vm856, %v1935, 0
      %v1992 = vsel %vm856, %v1936, 0
      %v1995 = vsel %vm856, %v1937, 0
      %v1998 = vsel %vm856, %v1938, 0
      %v2001 = vsel %vm856, %v1939, 0
      %2003 = vmatprep.subr.mxu0 0.0
      %2004 = vmatpush1.msra.mxu0 %v1940
      %2005 = vmatprep.subr.mxu0 0.0
      %2006 = vmatpush1.msra.mxu0 %v1941
      %2007 = vmatprep.subr.mxu0 0.0
      %2008 = vmatpush1.msra.mxu0 %v1942
      %2009 = vmatprep.subr.mxu0 0.0
      %2010 = vmatpush1.msra.mxu0 %v1943
      %2011 = vmatprep.subr.mxu0 0.0
      %2012 = vmatpush1.msra.mxu0 %v1944
      %2013 = vmatprep.subr.mxu0 0.0
      %2014 = vmatpush1.msra.mxu0 %v1945
      %2015 = vmatprep.subr.mxu0 0.0
      %2016 = vmatpush1.msra.mxu0 %v1946
      %2017 = vmatprep.subr.mxu0 0.0
      %2018 = vmatpush1.msra.mxu0 %v1947
      %2019 = vmatprep.subr.mxu0 0.0
      %2020 = vmatpush1.msra.mxu0 0.0
      %2021 = vmatprep.subr.mxu0 0.0
      %2022 = vmatpush1.msra.mxu0 0.0
      %2023 = vmatprep.subr.mxu0 0.0
      %2024 = vmatpush1.msra.mxu0 0.0
      %2025 = vmatprep.subr.mxu0 0.0
      %2026 = vmatpush1.msra.mxu0 0.0
      %2027 = vmatprep.subr.mxu0 0.0
      %2028 = vmatpush1.msra.mxu0 0.0
      %2029 = vmatprep.subr.mxu0 0.0
      %2030 = vmatpush1.msra.mxu0 0.0
      %2031 = vmatprep.subr.mxu0 0.0
      %2032 = vmatpush1.msra.mxu0 0.0
      %2033 = vmatprep.subr.mxu0 0.0
      %2034 = vmatpush1.msra.mxu0 0.0
      %2035 = vmatprep.subr.mxu0 0.0
      %2036 = vmatpush1.msra.mxu0 0.0
      %2037 = vmatprep.subr.mxu0 0.0
      %2038 = vmatpush1.msra.mxu0 0.0
      %2039 = vmatprep.subr.mxu0 0.0
      %2040 = vmatpush1.msra.mxu0 0.0
      %2041 = vmatprep.subr.mxu0 0.0
      %2042 = vmatpush1.msra.mxu0 0.0
      %2043 = vmatprep.subr.mxu0 0.0
      %2044 = vmatpush1.msra.mxu0 0.0
      %2045 = vmatprep.subr.mxu0 0.0
      %2046 = vmatpush1.msra.mxu0 0.0
      %2047 = vmatprep.subr.mxu0 0.0
      %2048 = vmatpush1.msra.mxu0 0.0
      %2049 = vmatprep.subr.mxu0 0.0
      %2050 = vmatpush1.msra.mxu0 0.0
      %2051 = vmatprep.subr.mxu0 0.0
      %2052 = vmatpush1.msra.mxu0 0.0
      %2053 = vmatprep.subr.mxu0 0.0
      %2054 = vmatpush1.msra.mxu0 0.0
      %2055 = vmatprep.subr.mxu0 0.0
      %2056 = vmatpush1.msra.mxu0 0.0
      %2057 = vmatprep.subr.mxu0 0.0
      %2058 = vmatpush1.msra.mxu0 0.0
      %2059 = vmatprep.subr.mxu0 0.0
      %2060 = vmatpush1.msra.mxu0 0.0
      %2061 = vmatprep.subr.mxu0 0.0
      %2062 = vmatpush1.msra.mxu0 0.0
      %2063 = vmatprep.subr.mxu0 0.0
      %2064 = vmatpush1.msra.mxu0 0.0
      %2065 = vmatprep.subr.mxu0 0.0
      %2066 = vmatpush1.msra.mxu0 0.0
      %2067 = vmatprep.mubr.f32.mxu0 0.0
      %2068 = vmatmul.mubr.f32.gmra.mrb[0].mxu0 %v1956
      %v2069 = vpop.f32.mrb[0].mxu0
      %v2070 = vadd.f32 %v1953, %v2069
      %v2071 = vpop.f32.mrb[0].mxu0
      %2072 = vmatprep.mubr.f32.mxu0 0.0
      %2073 = vmatmul.mubr.f32.gmra.mrb[0].mxu0 %v1959
      %v2074 = vpop.f32.mrb[0].mxu0
      %v2075 = vadd.f32 %v1953, %v2074
      %v2076 = vpop.f32.mrb[0].mxu0
      %2077 = vmatprep.mubr.f32.mxu0 0.0
      %2078 = vmatmul.mubr.f32.gmra.mrb[0].mxu0 %v1962
      %v2079 = vpop.f32.mrb[0].mxu0
      %v2080 = vadd.f32 %v1953, %v2079
      %v2081 = vpop.f32.mrb[0].mxu0
      %2082 = vmatprep.mubr.f32.mxu0 0.0
      %2083 = vmatmul.mubr.f32.gmra.mrb[0].mxu0 %v1965
      %v2084 = vpop.f32.mrb[0].mxu0
      %v2085 = vadd.f32 %v1953, %v2084
      %v2086 = vpop.f32.mrb[0].mxu0
      %2087 = vmatprep.mubr.f32.mxu0 0.0
      %2088 = vmatmul.mubr.f32.gmra.mrb[0].mxu0 %v1968
      %v2089 = vpop.f32.mrb[0].mxu0
      %v2090 = vadd.f32 %v1953, %v2089
      %v2091 = vpop.f32.mrb[0].mxu0
      %2092 = vmatprep.mubr.f32.mxu0 0.0
      %2093 = vmatmul.mubr.f32.gmra.mrb[0].mxu0 %v1971
      %v2094 = vpop.f32.mrb[0].mxu0
      %v2095 = vadd.f32 %v1953, %v2094
      %v2096 = vpop.f32.mrb[0].mxu0
      %2097 = vmatprep.mubr.f32.mxu0 0.0
      %2098 = vmatmul.mubr.f32.gmra.mrb[0].mxu0 %v1974
      %v2099 = vpop.f32.mrb[0].mxu0
      %v2100 = vadd.f32 %v1953, %v2099
      %v2101 = vpop.f32.mrb[0].mxu0
      %2102 = vmatprep.mubr.f32.mxu0 0.0
      %2103 = vmatmul.mubr.f32.gmra.mrb[0].mxu0 %v1977
      %v2104 = vpop.f32.mrb[0].mxu0
      %v2105 = vadd.f32 %v1953, %v2104
      %v2106 = vpop.f32.mrb[0].mxu0
      %2107 = vmatprep.mubr.f32.mxu0 0.0
      %2108 = vmatmul.mubr.f32.gmra.mrb[0].mxu0 %v1980
      %v2109 = vpop.f32.mrb[0].mxu0
      %v2110 = vadd.f32 %v1953, %v2109
      %v2111 = vpop.f32.mrb[0].mxu0
      %2112 = vmatprep.mubr.f32.mxu0 0.0
      %2113 = vmatmul.mubr.f32.gmra.mrb[0].mxu0 %v1983
      %v2114 = vpop.f32.mrb[0].mxu0
      %v2115 = vadd.f32 %v1953, %v2114
      %v2116 = vpop.f32.mrb[0].mxu0
      %2117 = vmatprep.mubr.f32.mxu0 0.0
      %2118 = vmatmul.mubr.f32.gmra.mrb[0].mxu0 %v1986
      %v2119 = vpop.f32.mrb[0].mxu0
      %v2120 = vadd.f32 %v1953, %v2119
      %v2121 = vpop.f32.mrb[0].mxu0
      %2122 = vmatprep.mubr.f32.mxu0 0.0
      %2123 = vmatmul.mubr.f32.gmra.mrb[0].mxu0 %v1989
      %v2124 = vpop.f32.mrb[0].mxu0
      %v2125 = vadd.f32 %v1953, %v2124
      %v2126 = vpop.f32.mrb[0].mxu0
      %2127 = vmatprep.mubr.f32.mxu0 0.0
      %2128 = vmatmul.mubr.f32.gmra.mrb[0].mxu0 %v1992
      %v2129 = vpop.f32.mrb[0].mxu0
      %v2130 = vadd.f32 %v1953, %v2129
      %v2131 = vpop.f32.mrb[0].mxu0
      %2132 = vmatprep.mubr.f32.mxu0 0.0
      %2133 = vmatmul.mubr.f32.gmra.mrb[0].mxu0 %v1995
      %v2134 = vpop.f32.mrb[0].mxu0
      %v2135 = vadd.f32 %v1953, %v2134
      %v2136 = vpop.f32.mrb[0].mxu0
      %2137 = vmatprep.mubr.f32.mxu0 0.0
      %2138 = vmatmul.mubr.f32.gmra.mrb[0].mxu0 %v1998
      %v2139 = vpop.f32.mrb[0].mxu0
      %v2140 = vadd.f32 %v1953, %v2139
      %v2141 = vpop.f32.mrb[0].mxu0
      %2142 = vmatprep.mubr.f32.mxu0 0.0
      %2143 = vmatmul.mubr.f32.gmra.mrb[0].mxu0 %v2001
      %v2144 = vpop.f32.mrb[0].mxu0
      %v2145 = vadd.f32 %v1953, %v2144
      %v2146 = vpop.f32.mrb[0].mxu0
      %2147 = vdwg.mxu0
      %2148 = vst.msk [vmem:[%s361] sm:$0xff] %vm387, %v2070
      %2149 = vst.msk [vmem:[%s361 + $0x8] sm:$0xff] %vm387, %v2075
      %2150 = vst.msk [vmem:[%s361 + $0x10] sm:$0xff] %vm387, %v2080
      %2151 = vst.msk [vmem:[%s361 + $0x18] sm:$0xff] %vm387, %v2085
      %2152 = vst.msk [vmem:[%s361 + $0x20] sm:$0xff] %vm387, %v2090
      %2153 = vst.msk [vmem:[%s361 + $0x28] sm:$0xff] %vm387, %v2095
      %2154 = vst.msk [vmem:[%s361 + $0x30] sm:$0xff] %vm387, %v2100
      %2155 = vst.msk [vmem:[%s361 + $0x38] sm:$0xff] %vm387, %v2105
      %2156 = vst.msk [vmem:[%s361 + $0x40] sm:$0xff] %vm387, %v2110
      %2157 = vst.msk [vmem:[%s361 + $0x48] sm:$0xff] %vm387, %v2115
      %2158 = vst.msk [vmem:[%s361 + $0x50] sm:$0xff] %vm387, %v2120
      %2159 = vst.msk [vmem:[%s361 + $0x58] sm:$0xff] %vm387, %v2125
      %2160 = vst.msk [vmem:[%s361 + $0x60] sm:$0xff] %vm387, %v2130
      %2161 = vst.msk [vmem:[%s361 + $0x68] sm:$0xff] %vm387, %v2135
      %2162 = vst.msk [vmem:[%s361 + $0x70] sm:$0xff] %vm387, %v2140
      %2163 = vst.msk [vmem:[%s361 + $0x78] sm:$0xff] %vm387, %v2145
      %s2164 = smul.u32 16, %s21
      %p2165 = scmp.lt.s32.totalorder %s2164, 31
      %s2166 = scalar_select %p2165, %s2164, 31
      %s2167 = smul.addr %s2166, 8
      %s2168 = scalar_lea.vmem %s10, %s2167
      // Predicated region
      $region61: #{tpu_custom_call.1} parent=59 // pred_check
        %p2169 = pneg %p254
      $region62: #{tpu_custom_call.1} parent=59 // pred_check_branch
        %2171 = sbr.rel (%p2169) target = $region64
      $region63: #{tpu_custom_call.1} parent=59 // pred_region
        %s2172 = smul.u32 16, %s21
      $region64: #{tpu_custom_call.1} parent=59 // pred_fallthru
        _
    $region60: #{tpu_custom_call.1} parent=5 // pred_fallthru
      _
    %p2173 = scmp.le.s32.totalorder 2, %s16
    // Predicated region
    $region65: #{tpu_custom_call.1} parent=5 // pred_check
      %p2174 = pneg %p2173
    $region66: #{tpu_custom_call.1} parent=5 // pred_check_branch
      %2176 = sbr.rel (%p2174) target = $region68
    $region67: #{tpu_custom_call.1} parent=5 // pred_region
      %s2177 = ssub.s32 %s16, 2
      // Predicated region
      $region69: #{tpu_custom_call.1} parent=67 // pred_check
        %p2178 = pneg %p260
      $region70: #{tpu_custom_call.1} parent=67 // pred_check_branch
        %2180 = sbr.rel (%p2178) target = $region72
      $region71: #{tpu_custom_call.1} parent=67 // pred_region
        %s2181 = smul.u32 16, %s22
        %p2182 = scmp.lt.s32.totalorder %s2181, 31
        %s2183 = scalar_select %p2182, %s2181, 31
        %s2184 = smul.addr %s2183, 8
        %s2185 = scalar_lea.vmem %s10, %s2184
      $region72: #{tpu_custom_call.1} parent=67 // pred_fallthru
        _
    $region68: #{tpu_custom_call.1} parent=5 // pred_fallthru
      _
  $region6: #{tpu_custom_call.1} parent=0 // loop_footer
    %s20 = sadd.s32 1, %s16
  $region7: #{tpu_custom_call.1} parent=0 // loop_footer_branch
    %15 = sbr.rel target = $region3
  $region8: #{tpu_custom_call.1} parent=0 // loop_exit
    _

</llo_original>
